<compile_context>
chip_gen: v5e
topology: v5e:2x2
jax: 0.10.0
libtpu: 0.0.40
codegen_flags: <defaults>
</compile_context>

<pallas_src>
import functools

import jax
import jax.numpy as jnp
from jax.experimental import pallas as pl
from jax.experimental.pallas import tpu as pltpu


CFG = dict(
    vocab_size=100,
    hidden=32,
    num_heads=4,
    num_layers=2,
    intermediate=64,
    max_pos=16,
    type_vocab=2,
    num_classes=2,
    eps=1e-12,
)

_MM_DTYPE = jnp.bfloat16  # MXU input dtype; accumulation is always f32.


# ----------------------------------------------------------------------------
# In-kernel helpers (operate on values, not refs)
# ----------------------------------------------------------------------------
def _layer_norm(x, g, b, eps):
    """LayerNorm over the last dim; statistics in f32."""
    mean = jnp.mean(x, axis=-1, keepdims=True)
    var = jnp.mean((x - mean) * (x - mean), axis=-1, keepdims=True)
    return (x - mean) * jax.lax.rsqrt(var + eps) * g + b


def _mm(x, w_bf16, b):
    """bf16 MXU matmul with f32 accumulation and f32 bias add."""
    return jnp.dot(x.astype(_MM_DTYPE), w_bf16,
                   preferred_element_type=jnp.float32) + b


def _gelu(x):
    # TODO(synk): BERT uses exact erf-GELU; tanh-approx GELU used here
    # (erf lowering availability in Mosaic is version dependent).
    return 0.5 * x * (1.0 + jnp.tanh(0.7978845608028654
                                     * (x + 0.044715 * x * x * x)))


# ----------------------------------------------------------------------------
# Fused kernel: embeddings + 2x(attention + FFN) + pooler + classifier
# ----------------------------------------------------------------------------
def _bert_fused_kernel(
    ids_ref,        # (B*S, 1)  int32   token ids
    mask_ref,       # (B*S, B*S) f32    block-diag + padding additive mask
    wemb_ref,       # (V, H)    f32     word embedding table
    pt_ref,         # (B*S, H)  f32     position + token-type embeddings
    wqkv_ref,       # (L, H, 3H) bf16   fused QKV weights (Q pre-scaled)
    wo_ref,         # (L, NH, Dh, H) bf16 attention output proj, per head
    wi_ref,         # (L, H, I) bf16
    wo2_ref,        # (L, I, H) bf16
    hw_ref,         # (H, H+C)  bf16    [pooler_w | cls_w]
    vec_ref,        # (2+8L+2, 3H) f32  packed LN gammas/betas + biases
    out_ref,        # (B, C)    f32
    *, B, S, H, NH, Dh, L, I, C, V, eps):

    BS = B * S
    f32 = jnp.float32

    def vrow(r, w):                      # static (1, w) view of a packed row
        return vec_ref[r:r + 1, 0:w]

    # ---- embeddings: one-hot gather on the MXU + position/type add --------
    ids = ids_ref[...]                                              # (BS, 1)
    onehot = (jax.lax.broadcasted_iota(jnp.int32, (BS, V), 1)
              == ids).astype(f32)                                   # (BS, V)
    emb = jnp.dot(onehot, wemb_ref[...],
                  preferred_element_type=f32) + pt_ref[...]         # (BS, H)
    hidden = _layer_norm(emb, vrow(0, H), vrow(1, H), eps)

    # ---- additive attention mask: built once, reused by all layers/heads --
    ext_mask = mask_ref[...]                                        # (BS, BS)

    for l in range(L):
        base = 2 + 8 * l

        # fused QKV projection (1/sqrt(Dh) already folded into the Q part)
        qkv = _mm(hidden, wqkv_ref[l], vrow(base + 0, 3 * H))       # (BS, 3H)

        # per-head attention on flat (BS, .) tiles; output projection folded
        # into the accumulation -> no lane-dim concat of heads.
        attn = jnp.zeros((BS, H), f32)
        for h in range(NH):
            q = qkv[:, h * Dh:(h + 1) * Dh].astype(_MM_DTYPE)
            k = qkv[:, H + h * Dh:H + (h + 1) * Dh].astype(_MM_DTYPE)
            v = qkv[:, 2 * H + h * Dh:2 * H + (h + 1) * Dh].astype(_MM_DTYPE)

            s = jnp.einsum("qd,kd->qk", q, k,
                           preferred_element_type=f32) + ext_mask   # (BS, BS)
            s = s - jnp.max(s, axis=-1, keepdims=True)
            p = jnp.exp(s)
            p = p / jnp.sum(p, axis=-1, keepdims=True)              # exact
            ctx = jnp.dot(p.astype(_MM_DTYPE), v,
                          preferred_element_type=f32)               # (BS, Dh)
            attn = attn + jnp.dot(ctx.astype(_MM_DTYPE), wo_ref[l, h],
                                  preferred_element_type=f32)       # (BS, H)

        attn = attn + vrow(base + 1, H)
        hidden = _layer_norm(attn + hidden,
                             vrow(base + 2, H), vrow(base + 3, H), eps)

        # feed-forward + residual layer norm
        inter = _gelu(_mm(hidden, wi_ref[l], vrow(base + 4, I)))
        ffn = _mm(inter, wo2_ref[l], vrow(base + 5, H))
        hidden = _layer_norm(ffn + hidden,
                             vrow(base + 6, H), vrow(base + 7, H), eps)

    # ---- pooler on the [CLS] rows + classifier head -------------------------
    # [CLS] rows sit at static sublane offsets b*S -> cheap static slices.
    first = jnp.concatenate([hidden[b * S:b * S + 1, :] for b in range(B)],
                            axis=0)                                  # (B, H)
    r_pool_b = 2 + 8 * L
    pooled = jnp.tanh(_mm(first, hw_ref[:, 0:H], vrow(r_pool_b, H)))
    # classifier dropout (p=0.1) is identity at inference
    out_ref[...] = _mm(pooled, hw_ref[:, H:H + C], vrow(r_pool_b + 1, C))


# ----------------------------------------------------------------------------
# Wrapper: operand packing + pallas_call
# ----------------------------------------------------------------------------
def _full_spec(shape):
    zeros = (0,) * len(shape)
    return pl.BlockSpec(shape, lambda i, _z=zeros: _z)


def bert_news_classifier(params, input_ids, attention_mask, cfg=CFG):
    B, S = input_ids.shape
    H, NH, L = cfg["hidden"], cfg["num_heads"], cfg["num_layers"]
    I, C, V = cfg["intermediate"], cfg["num_classes"], cfg["vocab_size"]
    Dh = H // NH
    BS = B * S
    scale = 1.0 / (Dh ** 0.5)
    W = 3 * H

    # ---- tiny, parameter-only operand packing (runs once per call) --------
    # Fold 1/sqrt(Dh) into the Q columns of the fused QKV weight + bias.
    q_scale = jnp.concatenate(
        [jnp.full((H,), scale, jnp.float32), jnp.ones((2 * H,), jnp.float32)])
    wqkv = (params["wqkv"] * q_scale).astype(_MM_DTYPE)              # (L,H,3H)
    bqkv_s = params["bqkv"] * q_scale                                # (L,1,3H)
    wo_h = params["wo"].reshape(L, NH, Dh, H).astype(_MM_DTYPE)      # per-head
    wi = params["wi"].astype(_MM_DTYPE)
    wo2 = params["wo2"].astype(_MM_DTYPE)
    head_w = jnp.concatenate([params["pooler_w"], params["cls_w"]],
                             axis=1).astype(_MM_DTYPE)               # (H, H+C)

    def row(v):
        v = v.reshape(1, -1).astype(jnp.float32)
        return jnp.pad(v, ((0, 0), (0, W - v.shape[1])))

    # Packed vector params; row layout must match the kernel's `vrow` offsets:
    #   0: emb_ln_g   1: emb_ln_b
    #   per layer l (base = 2 + 8l): bqkv, bo, attn_g, attn_b, bi, bo2, ffn_g, ffn_b
    #   2+8L: pooler_b   2+8L+1: cls_b
    rows = [row(params["emb_ln_g"]), row(params["emb_ln_b"])]
    for l in range(L):
        rows += [row(bqkv_s[l]), row(params["bo"][l]),
                 row(params["attn_ln_g"][l]), row(params["attn_ln_b"][l]),
                 row(params["bi"][l]), row(params["bo2"][l]),
                 row(params["ffn_ln_g"][l]), row(params["ffn_ln_b"][l])]
    rows += [row(params["pooler_b"]), row(params["cls_b"])]
    vecs = jnp.concatenate(rows, axis=0)                             # (2+8L+2, 3H)

    # Position + token-type embeddings (token_type_ids = 0 for every token,
    # matching the reference's default).
    pos_type = jnp.tile(params["pos_emb"][:S]
                        + params["type_emb"][0][None, :], (B, 1))    # (BS, H)

    # ---- input-dependent operands ------------------------------------------
    ids = input_ids.reshape(BS, 1).astype(jnp.int32)
    bid = jnp.repeat(jnp.arange(B, dtype=jnp.int32), S)              # (BS,)
    keep = (bid[:, None] == bid[None, :]) \
        & (attention_mask.reshape(-1)[None, :] > 0)
    ext_mask = jnp.where(keep, 0.0, -10000.0).astype(jnp.float32)    # (BS, BS)

    operands = [ids, ext_mask, params["word_emb"], pos_type,
                wqkv, wo_h, wi, wo2, head_w, vecs]

    kernel = functools.partial(
        _bert_fused_kernel, B=B, S=S, H=H, NH=NH, Dh=Dh, L=L, I=I, C=C, V=V,
        eps=cfg["eps"])

    return pl.pallas_call(
        kernel,
        out_shape=jax.ShapeDtypeStruct((B, C), jnp.float32),
        grid=(1,),
        in_specs=[_full_spec(x.shape) for x in operands],
        out_specs=_full_spec((B, C)),
        compiler_params=pltpu.CompilerParams(
            dimension_semantics=("arbitrary",)),
    )(*operands)


# ----------------------------------------------------------------------------
# Deterministic parameter init (synthetic weights, natural f32 parameterization)
# ----------------------------------------------------------------------------
def init_params(key, cfg):
    H, I, L = cfg["hidden"], cfg["intermediate"], cfg["num_layers"]
    C = cfg["num_classes"]
    keys = iter(jax.random.split(key, 16))

    def n(shape):
        return 0.02 * jax.random.normal(next(keys), shape, jnp.float32)

    return {
        "word_emb": n((cfg["vocab_size"], H)),
        "pos_emb": n((cfg["max_pos"], H)),
        "type_emb": n((cfg["type_vocab"], H)),
        "emb_ln_g": jnp.ones((1, H), jnp.float32),
        "emb_ln_b": jnp.zeros((1, H), jnp.float32),
        # per-layer weights stacked along a leading L axis; Q|K|V fused.
        "wqkv": n((L, H, 3 * H)),
        "bqkv": jnp.zeros((L, 1, 3 * H), jnp.float32),
        "wo": n((L, H, H)),
        "bo": jnp.zeros((L, 1, H), jnp.float32),
        "attn_ln_g": jnp.ones((L, 1, H), jnp.float32),
        "attn_ln_b": jnp.zeros((L, 1, H), jnp.float32),
        "wi": n((L, H, I)),
        "bi": jnp.zeros((L, 1, I), jnp.float32),
        "wo2": n((L, I, H)),
        "bo2": jnp.zeros((L, 1, H), jnp.float32),
        "ffn_ln_g": jnp.ones((L, 1, H), jnp.float32),
        "ffn_ln_b": jnp.zeros((L, 1, H), jnp.float32),
        "pooler_w": n((H, H)),
        "pooler_b": jnp.zeros((1, H), jnp.float32),
        "cls_w": n((H, C)),
        "cls_b": jnp.zeros((1, C), jnp.float32),
    }


# ----------------------------------------------------------------------------
if __name__ == "__main__":
    B, S = 2, 8
    key = jax.random.PRNGKey(0)
    k_param, k_ids = jax.random.split(key)

    params = init_params(k_param, CFG)
    input_ids = jax.random.randint(k_ids, (B, S), 0, CFG["vocab_size"],
                                   dtype=jnp.int32)
    # second example has its last two tokens padded out
    attention_mask = jnp.array(
        [[1, 1, 1, 1, 1, 1, 1, 1],
         [1, 1, 1, 1, 1, 1, 0, 0]], dtype=jnp.int32)

    logits = jax.jit(bert_news_classifier)(params, input_ids, attention_mask)
    logits = jax.block_until_ready(logits)
    assert logits.shape == (B, CFG["num_classes"])
    assert bool(jnp.all(jnp.isfinite(logits)))
    print("KERNEL_OK")
</pallas_src>

<mosaic_0001>
module attributes {stable_mosaic.version = 11 : i64} {
  func.func @_bert_fused_kernel(%arg0: i32, %arg1: memref<16x1xi32, #tpu.memory_space<vmem>>, %arg2: memref<16x16xf32, #tpu.memory_space<vmem>>, %arg3: memref<100x32xf32, #tpu.memory_space<vmem>>, %arg4: memref<16x32xf32, #tpu.memory_space<vmem>>, %arg5: memref<2x32x96xbf16, #tpu.memory_space<vmem>>, %arg6: memref<2x4x8x32xbf16, #tpu.memory_space<vmem>>, %arg7: memref<2x32x64xbf16, #tpu.memory_space<vmem>>, %arg8: memref<2x64x32xbf16, #tpu.memory_space<vmem>>, %arg9: memref<32x34xbf16, #tpu.memory_space<vmem>>, %arg10: memref<20x96xf32, #tpu.memory_space<vmem>>, %arg11: memref<2x2xf32, #tpu.memory_space<vmem>>) attributes {dimension_semantics = [#tpu.dimension_semantics<arbitrary>], iteration_bounds = array<i64: 1>, scalar_prefetch = 0 : i64, scratch_operands = 0 : i64, tpu.core_type = #tpu.core_type<tc>, window_params = [{pipeline_mode = #tpu.pipeline_mode<synchronous>, transform_indices = @transform_0, window_bounds = array<i64: 16, 1>}, {pipeline_mode = #tpu.pipeline_mode<synchronous>, transform_indices = @transform_1, window_bounds = array<i64: 16, 16>}, {pipeline_mode = #tpu.pipeline_mode<synchronous>, transform_indices = @transform_2, window_bounds = array<i64: 100, 32>}, {pipeline_mode = #tpu.pipeline_mode<synchronous>, transform_indices = @transform_3, window_bounds = array<i64: 16, 32>}, {pipeline_mode = #tpu.pipeline_mode<synchronous>, transform_indices = @transform_4, window_bounds = array<i64: 2, 32, 96>}, {pipeline_mode = #tpu.pipeline_mode<synchronous>, transform_indices = @transform_5, window_bounds = array<i64: 2, 4, 8, 32>}, {pipeline_mode = #tpu.pipeline_mode<synchronous>, transform_indices = @transform_6, window_bounds = array<i64: 2, 32, 64>}, {pipeline_mode = #tpu.pipeline_mode<synchronous>, transform_indices = @transform_7, window_bounds = array<i64: 2, 64, 32>}, {pipeline_mode = #tpu.pipeline_mode<synchronous>, transform_indices = @transform_8, window_bounds = array<i64: 32, 34>}, {pipeline_mode = #tpu.pipeline_mode<synchronous>, transform_indices = @transform_9, window_bounds = array<i64: 20, 96>}, {pipeline_mode = #tpu.pipeline_mode<synchronous>, transform_indices = @transform_10, window_bounds = array<i64: 2, 2>}]} {
    %c0 = arith.constant 0 : index
    %c0_0 = arith.constant 0 : index
    %0 = vector.load %arg1[%c0, %c0_0] : memref<16x1xi32, #tpu.memory_space<vmem>>, vector<16x1xi32>
    %1 = tpu.iota {dimensions = array<i32: 1>} : vector<16x100xi32>
    %2 = vector.broadcast %0 : vector<16x1xi32> to vector<16x100xi32>
    %3 = arith.cmpi eq, %1, %2 : vector<16x100xi32>
    %4 = arith.extui %3 : vector<16x100xi1> to vector<16x100xi32>
    %5 = arith.sitofp %4 : vector<16x100xi32> to vector<16x100xf32>
    %c0_1 = arith.constant 0 : index
    %c0_2 = arith.constant 0 : index
    %6 = vector.load %arg3[%c0_1, %c0_2] : memref<100x32xf32, #tpu.memory_space<vmem>>, vector<100x32xf32>
    %cst = arith.constant dense<0.000000e+00> : vector<16x32xf32>
    %7 = tpu.matmul %5, %6, %cst {dimension_numbers = #tpu.dot_dimension_numbers<[1], [0], [0], [1], [0, 0, 1, 1], [], []>} : vector<16x100xf32>, vector<100x32xf32>, vector<16x32xf32> -> vector<16x32xf32>
    %c0_3 = arith.constant 0 : index
    %c0_4 = arith.constant 0 : index
    %8 = vector.load %arg4[%c0_3, %c0_4] : memref<16x32xf32, #tpu.memory_space<vmem>>, vector<16x32xf32>
    %9 = arith.addf %7, %8 : vector<16x32xf32>
    %c0_5 = arith.constant 0 : index
    %c0_6 = arith.constant 0 : index
    %10 = vector.load %arg10[%c0_5, %c0_6] : memref<20x96xf32, #tpu.memory_space<vmem>>, vector<1x32xf32>
    %c1 = arith.constant 1 : index
    %c0_7 = arith.constant 0 : index
    %11 = vector.load %arg10[%c1, %c0_7] : memref<20x96xf32, #tpu.memory_space<vmem>>, vector<1x32xf32>
    %cst_8 = arith.constant dense<0.000000e+00> : vector<16xf32>
    %12 = vector.multi_reduction <add>, %9, %cst_8 [1] : vector<16x32xf32> to vector<16xf32>
    %13 = vector.shape_cast %12 : vector<16xf32> to vector<16x1xf32>
    %cst_9 = arith.constant 3.200000e+01 : f32
    %14 = vector.broadcast %cst_9 : f32 to vector<16x1xf32>
    %15 = arith.divf %13, %14 : vector<16x1xf32>
    %16 = vector.broadcast %15 : vector<16x1xf32> to vector<16x32xf32>
    %17 = arith.subf %9, %16 : vector<16x32xf32>
    %18 = vector.broadcast %15 : vector<16x1xf32> to vector<16x32xf32>
    %19 = arith.subf %9, %18 : vector<16x32xf32>
    %20 = arith.mulf %17, %19 : vector<16x32xf32>
    %cst_10 = arith.constant dense<0.000000e+00> : vector<16xf32>
    %21 = vector.multi_reduction <add>, %20, %cst_10 [1] : vector<16x32xf32> to vector<16xf32>
    %22 = vector.shape_cast %21 : vector<16xf32> to vector<16x1xf32>
    %cst_11 = arith.constant 3.200000e+01 : f32
    %23 = vector.broadcast %cst_11 : f32 to vector<16x1xf32>
    %24 = arith.divf %22, %23 : vector<16x1xf32>
    %25 = vector.broadcast %15 : vector<16x1xf32> to vector<16x32xf32>
    %26 = arith.subf %9, %25 : vector<16x32xf32>
    %cst_12 = arith.constant 9.99999996E-13 : f32
    %27 = vector.broadcast %cst_12 : f32 to vector<16x1xf32>
    %28 = arith.addf %24, %27 : vector<16x1xf32>
    %29 = math.rsqrt %28 : vector<16x1xf32>
    %30 = vector.broadcast %29 : vector<16x1xf32> to vector<16x32xf32>
    %31 = arith.mulf %26, %30 : vector<16x32xf32>
    %32 = vector.broadcast %10 : vector<1x32xf32> to vector<16x32xf32>
    %33 = arith.mulf %31, %32 : vector<16x32xf32>
    %34 = vector.broadcast %11 : vector<1x32xf32> to vector<16x32xf32>
    %35 = arith.addf %33, %34 : vector<16x32xf32>
    %c0_13 = arith.constant 0 : index
    %c0_14 = arith.constant 0 : index
    %36 = vector.load %arg2[%c0_13, %c0_14] : memref<16x16xf32, #tpu.memory_space<vmem>>, vector<16x16xf32>
    %c0_15 = arith.constant 0 : index
    %c0_16 = arith.constant 0 : index
    %c0_17 = arith.constant 0 : index
    %37 = vector.load %arg5[%c0_15, %c0_16, %c0_17] : memref<2x32x96xbf16, #tpu.memory_space<vmem>>, vector<1x32x96xbf16>
    %38 = vector.shape_cast %37 : vector<1x32x96xbf16> to vector<32x96xbf16>
    %c2 = arith.constant 2 : index
    %c0_18 = arith.constant 0 : index
    %39 = vector.load %arg10[%c2, %c0_18] : memref<20x96xf32, #tpu.memory_space<vmem>>, vector<1x96xf32>
    %40 = arith.truncf %35 : vector<16x32xf32> to vector<16x32xbf16>
    %cst_19 = arith.constant dense<0.000000e+00> : vector<16x96xf32>
    %41 = tpu.matmul %40, %38, %cst_19 {dimension_numbers = #tpu.dot_dimension_numbers<[1], [0], [0], [1], [0, 0, 1, 1], [], []>} : vector<16x32xbf16>, vector<32x96xbf16>, vector<16x96xf32> -> vector<16x96xf32>
    %42 = vector.broadcast %39 : vector<1x96xf32> to vector<16x96xf32>
    %43 = arith.addf %41, %42 : vector<16x96xf32>
    %cst_20 = arith.constant 0.000000e+00 : f32
    %44 = vector.broadcast %cst_20 : f32 to vector<16x32xf32>
    %45 = vector.extract_strided_slice %43 {offsets = [0, 0], sizes = [16, 8], strides = [1, 1]} : vector<16x96xf32> to vector<16x8xf32>
    %46 = arith.truncf %45 : vector<16x8xf32> to vector<16x8xbf16>
    %47 = vector.extract_strided_slice %43 {offsets = [0, 32], sizes = [16, 8], strides = [1, 1]} : vector<16x96xf32> to vector<16x8xf32>
    %48 = arith.truncf %47 : vector<16x8xf32> to vector<16x8xbf16>
    %49 = vector.extract_strided_slice %43 {offsets = [0, 64], sizes = [16, 8], strides = [1, 1]} : vector<16x96xf32> to vector<16x8xf32>
    %50 = arith.truncf %49 : vector<16x8xf32> to vector<16x8xbf16>
    "tpu.trace_start"() <{level = 10 : i32, message = "qd,kd->qk"}> : () -> ()
    %cst_21 = arith.constant dense<0.000000e+00> : vector<16x16xf32>
    %51 = tpu.matmul %46, %48, %cst_21 {dimension_numbers = #tpu.dot_dimension_numbers<[1], [1], [0], [0], [0, 0, 1, 0], [], []>} : vector<16x8xbf16>, vector<16x8xbf16>, vector<16x16xf32> -> vector<16x16xf32>
    "tpu.trace_stop"() : () -> ()
    %52 = arith.addf %51, %36 : vector<16x16xf32>
    %cst_22 = arith.constant dense<0xFF800000> : vector<16xf32>
    %53 = vector.multi_reduction <maximumf>, %52, %cst_22 [1] : vector<16x16xf32> to vector<16xf32>
    %54 = vector.shape_cast %53 : vector<16xf32> to vector<16x1xf32>
    %55 = vector.broadcast %54 : vector<16x1xf32> to vector<16x16xf32>
    %56 = arith.subf %52, %55 : vector<16x16xf32>
    %57 = math.exp %56 : vector<16x16xf32>
    %cst_23 = arith.constant dense<0.000000e+00> : vector<16xf32>
    %58 = vector.multi_reduction <add>, %57, %cst_23 [1] : vector<16x16xf32> to vector<16xf32>
    %59 = vector.shape_cast %58 : vector<16xf32> to vector<16x1xf32>
    %60 = vector.broadcast %59 : vector<16x1xf32> to vector<16x16xf32>
    %61 = arith.divf %57, %60 : vector<16x16xf32>
    %62 = arith.truncf %61 : vector<16x16xf32> to vector<16x16xbf16>
    %cst_24 = arith.constant dense<0.000000e+00> : vector<16x8xf32>
    %63 = tpu.matmul %62, %50, %cst_24 {dimension_numbers = #tpu.dot_dimension_numbers<[1], [0], [0], [1], [0, 0, 1, 1], [], []>} : vector<16x16xbf16>, vector<16x8xbf16>, vector<16x8xf32> -> vector<16x8xf32>
    %64 = arith.truncf %63 : vector<16x8xf32> to vector<16x8xbf16>
    %c0_25 = arith.constant 0 : index
    %c0_26 = arith.constant 0 : index
    %c0_27 = arith.constant 0 : index
    %c0_28 = arith.constant 0 : index
    %65 = vector.load %arg6[%c0_25, %c0_26, %c0_27, %c0_28] : memref<2x4x8x32xbf16, #tpu.memory_space<vmem>>, vector<1x1x8x32xbf16>
    %66 = vector.shape_cast %65 : vector<1x1x8x32xbf16> to vector<8x32xbf16>
    %cst_29 = arith.constant dense<0.000000e+00> : vector<16x32xf32>
    %67 = tpu.matmul %64, %66, %cst_29 {dimension_numbers = #tpu.dot_dimension_numbers<[1], [0], [0], [1], [0, 0, 1, 1], [], []>} : vector<16x8xbf16>, vector<8x32xbf16>, vector<16x32xf32> -> vector<16x32xf32>
    %68 = arith.addf %44, %67 : vector<16x32xf32>
    %69 = vector.extract_strided_slice %43 {offsets = [0, 8], sizes = [16, 8], strides = [1, 1]} : vector<16x96xf32> to vector<16x8xf32>
    %70 = arith.truncf %69 : vector<16x8xf32> to vector<16x8xbf16>
    %71 = vector.extract_strided_slice %43 {offsets = [0, 40], sizes = [16, 8], strides = [1, 1]} : vector<16x96xf32> to vector<16x8xf32>
    %72 = arith.truncf %71 : vector<16x8xf32> to vector<16x8xbf16>
    %73 = vector.extract_strided_slice %43 {offsets = [0, 72], sizes = [16, 8], strides = [1, 1]} : vector<16x96xf32> to vector<16x8xf32>
    %74 = arith.truncf %73 : vector<16x8xf32> to vector<16x8xbf16>
    "tpu.trace_start"() <{level = 10 : i32, message = "qd,kd->qk"}> : () -> ()
    %cst_30 = arith.constant dense<0.000000e+00> : vector<16x16xf32>
    %75 = tpu.matmul %70, %72, %cst_30 {dimension_numbers = #tpu.dot_dimension_numbers<[1], [1], [0], [0], [0, 0, 1, 0], [], []>} : vector<16x8xbf16>, vector<16x8xbf16>, vector<16x16xf32> -> vector<16x16xf32>
    "tpu.trace_stop"() : () -> ()
    %76 = arith.addf %75, %36 : vector<16x16xf32>
    %cst_31 = arith.constant dense<0xFF800000> : vector<16xf32>
    %77 = vector.multi_reduction <maximumf>, %76, %cst_31 [1] : vector<16x16xf32> to vector<16xf32>
    %78 = vector.shape_cast %77 : vector<16xf32> to vector<16x1xf32>
    %79 = vector.broadcast %78 : vector<16x1xf32> to vector<16x16xf32>
    %80 = arith.subf %76, %79 : vector<16x16xf32>
    %81 = math.exp %80 : vector<16x16xf32>
    %cst_32 = arith.constant dense<0.000000e+00> : vector<16xf32>
    %82 = vector.multi_reduction <add>, %81, %cst_32 [1] : vector<16x16xf32> to vector<16xf32>
    %83 = vector.shape_cast %82 : vector<16xf32> to vector<16x1xf32>
    %84 = vector.broadcast %83 : vector<16x1xf32> to vector<16x16xf32>
    %85 = arith.divf %81, %84 : vector<16x16xf32>
    %86 = arith.truncf %85 : vector<16x16xf32> to vector<16x16xbf16>
    %cst_33 = arith.constant dense<0.000000e+00> : vector<16x8xf32>
    %87 = tpu.matmul %86, %74, %cst_33 {dimension_numbers = #tpu.dot_dimension_numbers<[1], [0], [0], [1], [0, 0, 1, 1], [], []>} : vector<16x16xbf16>, vector<16x8xbf16>, vector<16x8xf32> -> vector<16x8xf32>
    %88 = arith.truncf %87 : vector<16x8xf32> to vector<16x8xbf16>
    %c0_34 = arith.constant 0 : index
    %c1_35 = arith.constant 1 : index
    %c0_36 = arith.constant 0 : index
    %c0_37 = arith.constant 0 : index
    %89 = vector.load %arg6[%c0_34, %c1_35, %c0_36, %c0_37] : memref<2x4x8x32xbf16, #tpu.memory_space<vmem>>, vector<1x1x8x32xbf16>
    %90 = vector.shape_cast %89 : vector<1x1x8x32xbf16> to vector<8x32xbf16>
    %cst_38 = arith.constant dense<0.000000e+00> : vector<16x32xf32>
    %91 = tpu.matmul %88, %90, %cst_38 {dimension_numbers = #tpu.dot_dimension_numbers<[1], [0], [0], [1], [0, 0, 1, 1], [], []>} : vector<16x8xbf16>, vector<8x32xbf16>, vector<16x32xf32> -> vector<16x32xf32>
    %92 = arith.addf %68, %91 : vector<16x32xf32>
    %93 = vector.extract_strided_slice %43 {offsets = [0, 16], sizes = [16, 8], strides = [1, 1]} : vector<16x96xf32> to vector<16x8xf32>
    %94 = arith.truncf %93 : vector<16x8xf32> to vector<16x8xbf16>
    %95 = vector.extract_strided_slice %43 {offsets = [0, 48], sizes = [16, 8], strides = [1, 1]} : vector<16x96xf32> to vector<16x8xf32>
    %96 = arith.truncf %95 : vector<16x8xf32> to vector<16x8xbf16>
    %97 = vector.extract_strided_slice %43 {offsets = [0, 80], sizes = [16, 8], strides = [1, 1]} : vector<16x96xf32> to vector<16x8xf32>
    %98 = arith.truncf %97 : vector<16x8xf32> to vector<16x8xbf16>
    "tpu.trace_start"() <{level = 10 : i32, message = "qd,kd->qk"}> : () -> ()
    %cst_39 = arith.constant dense<0.000000e+00> : vector<16x16xf32>
    %99 = tpu.matmul %94, %96, %cst_39 {dimension_numbers = #tpu.dot_dimension_numbers<[1], [1], [0], [0], [0, 0, 1, 0], [], []>} : vector<16x8xbf16>, vector<16x8xbf16>, vector<16x16xf32> -> vector<16x16xf32>
    "tpu.trace_stop"() : () -> ()
    %100 = arith.addf %99, %36 : vector<16x16xf32>
    %cst_40 = arith.constant dense<0xFF800000> : vector<16xf32>
    %101 = vector.multi_reduction <maximumf>, %100, %cst_40 [1] : vector<16x16xf32> to vector<16xf32>
    %102 = vector.shape_cast %101 : vector<16xf32> to vector<16x1xf32>
    %103 = vector.broadcast %102 : vector<16x1xf32> to vector<16x16xf32>
    %104 = arith.subf %100, %103 : vector<16x16xf32>
    %105 = math.exp %104 : vector<16x16xf32>
    %cst_41 = arith.constant dense<0.000000e+00> : vector<16xf32>
    %106 = vector.multi_reduction <add>, %105, %cst_41 [1] : vector<16x16xf32> to vector<16xf32>
    %107 = vector.shape_cast %106 : vector<16xf32> to vector<16x1xf32>
    %108 = vector.broadcast %107 : vector<16x1xf32> to vector<16x16xf32>
    %109 = arith.divf %105, %108 : vector<16x16xf32>
    %110 = arith.truncf %109 : vector<16x16xf32> to vector<16x16xbf16>
    %cst_42 = arith.constant dense<0.000000e+00> : vector<16x8xf32>
    %111 = tpu.matmul %110, %98, %cst_42 {dimension_numbers = #tpu.dot_dimension_numbers<[1], [0], [0], [1], [0, 0, 1, 1], [], []>} : vector<16x16xbf16>, vector<16x8xbf16>, vector<16x8xf32> -> vector<16x8xf32>
    %112 = arith.truncf %111 : vector<16x8xf32> to vector<16x8xbf16>
    %c0_43 = arith.constant 0 : index
    %c2_44 = arith.constant 2 : index
    %c0_45 = arith.constant 0 : index
    %c0_46 = arith.constant 0 : index
    %113 = vector.load %arg6[%c0_43, %c2_44, %c0_45, %c0_46] : memref<2x4x8x32xbf16, #tpu.memory_space<vmem>>, vector<1x1x8x32xbf16>
    %114 = vector.shape_cast %113 : vector<1x1x8x32xbf16> to vector<8x32xbf16>
    %cst_47 = arith.constant dense<0.000000e+00> : vector<16x32xf32>
    %115 = tpu.matmul %112, %114, %cst_47 {dimension_numbers = #tpu.dot_dimension_numbers<[1], [0], [0], [1], [0, 0, 1, 1], [], []>} : vector<16x8xbf16>, vector<8x32xbf16>, vector<16x32xf32> -> vector<16x32xf32>
    %116 = arith.addf %92, %115 : vector<16x32xf32>
    %117 = vector.extract_strided_slice %43 {offsets = [0, 24], sizes = [16, 8], strides = [1, 1]} : vector<16x96xf32> to vector<16x8xf32>
    %118 = arith.truncf %117 : vector<16x8xf32> to vector<16x8xbf16>
    %119 = vector.extract_strided_slice %43 {offsets = [0, 56], sizes = [16, 8], strides = [1, 1]} : vector<16x96xf32> to vector<16x8xf32>
    %120 = arith.truncf %119 : vector<16x8xf32> to vector<16x8xbf16>
    %121 = vector.extract_strided_slice %43 {offsets = [0, 88], sizes = [16, 8], strides = [1, 1]} : vector<16x96xf32> to vector<16x8xf32>
    %122 = arith.truncf %121 : vector<16x8xf32> to vector<16x8xbf16>
    "tpu.trace_start"() <{level = 10 : i32, message = "qd,kd->qk"}> : () -> ()
    %cst_48 = arith.constant dense<0.000000e+00> : vector<16x16xf32>
    %123 = tpu.matmul %118, %120, %cst_48 {dimension_numbers = #tpu.dot_dimension_numbers<[1], [1], [0], [0], [0, 0, 1, 0], [], []>} : vector<16x8xbf16>, vector<16x8xbf16>, vector<16x16xf32> -> vector<16x16xf32>
    "tpu.trace_stop"() : () -> ()
    %124 = arith.addf %123, %36 : vector<16x16xf32>
    %cst_49 = arith.constant dense<0xFF800000> : vector<16xf32>
    %125 = vector.multi_reduction <maximumf>, %124, %cst_49 [1] : vector<16x16xf32> to vector<16xf32>
    %126 = vector.shape_cast %125 : vector<16xf32> to vector<16x1xf32>
    %127 = vector.broadcast %126 : vector<16x1xf32> to vector<16x16xf32>
    %128 = arith.subf %124, %127 : vector<16x16xf32>
    %129 = math.exp %128 : vector<16x16xf32>
    %cst_50 = arith.constant dense<0.000000e+00> : vector<16xf32>
    %130 = vector.multi_reduction <add>, %129, %cst_50 [1] : vector<16x16xf32> to vector<16xf32>
    %131 = vector.shape_cast %130 : vector<16xf32> to vector<16x1xf32>
    %132 = vector.broadcast %131 : vector<16x1xf32> to vector<16x16xf32>
    %133 = arith.divf %129, %132 : vector<16x16xf32>
    %134 = arith.truncf %133 : vector<16x16xf32> to vector<16x16xbf16>
    %cst_51 = arith.constant dense<0.000000e+00> : vector<16x8xf32>
    %135 = tpu.matmul %134, %122, %cst_51 {dimension_numbers = #tpu.dot_dimension_numbers<[1], [0], [0], [1], [0, 0, 1, 1], [], []>} : vector<16x16xbf16>, vector<16x8xbf16>, vector<16x8xf32> -> vector<16x8xf32>
    %136 = arith.truncf %135 : vector<16x8xf32> to vector<16x8xbf16>
    %c0_52 = arith.constant 0 : index
    %c3 = arith.constant 3 : index
    %c0_53 = arith.constant 0 : index
    %c0_54 = arith.constant 0 : index
    %137 = vector.load %arg6[%c0_52, %c3, %c0_53, %c0_54] : memref<2x4x8x32xbf16, #tpu.memory_space<vmem>>, vector<1x1x8x32xbf16>
    %138 = vector.shape_cast %137 : vector<1x1x8x32xbf16> to vector<8x32xbf16>
    %cst_55 = arith.constant dense<0.000000e+00> : vector<16x32xf32>
    %139 = tpu.matmul %136, %138, %cst_55 {dimension_numbers = #tpu.dot_dimension_numbers<[1], [0], [0], [1], [0, 0, 1, 1], [], []>} : vector<16x8xbf16>, vector<8x32xbf16>, vector<16x32xf32> -> vector<16x32xf32>
    %140 = arith.addf %116, %139 : vector<16x32xf32>
    %c3_56 = arith.constant 3 : index
    %c0_57 = arith.constant 0 : index
    %141 = vector.load %arg10[%c3_56, %c0_57] : memref<20x96xf32, #tpu.memory_space<vmem>>, vector<1x32xf32>
    %142 = vector.broadcast %141 : vector<1x32xf32> to vector<16x32xf32>
    %143 = arith.addf %140, %142 : vector<16x32xf32>
    %144 = arith.addf %143, %35 : vector<16x32xf32>
    %c4 = arith.constant 4 : index
    %c0_58 = arith.constant 0 : index
    %145 = vector.load %arg10[%c4, %c0_58] : memref<20x96xf32, #tpu.memory_space<vmem>>, vector<1x32xf32>
    %c5 = arith.constant 5 : index
    %c0_59 = arith.constant 0 : index
    %146 = vector.load %arg10[%c5, %c0_59] : memref<20x96xf32, #tpu.memory_space<vmem>>, vector<1x32xf32>
    %cst_60 = arith.constant dense<0.000000e+00> : vector<16xf32>
    %147 = vector.multi_reduction <add>, %144, %cst_60 [1] : vector<16x32xf32> to vector<16xf32>
    %148 = vector.shape_cast %147 : vector<16xf32> to vector<16x1xf32>
    %cst_61 = arith.constant 3.200000e+01 : f32
    %149 = vector.broadcast %cst_61 : f32 to vector<16x1xf32>
    %150 = arith.divf %148, %149 : vector<16x1xf32>
    %151 = vector.broadcast %150 : vector<16x1xf32> to vector<16x32xf32>
    %152 = arith.subf %144, %151 : vector<16x32xf32>
    %153 = vector.broadcast %150 : vector<16x1xf32> to vector<16x32xf32>
    %154 = arith.subf %144, %153 : vector<16x32xf32>
    %155 = arith.mulf %152, %154 : vector<16x32xf32>
    %cst_62 = arith.constant dense<0.000000e+00> : vector<16xf32>
    %156 = vector.multi_reduction <add>, %155, %cst_62 [1] : vector<16x32xf32> to vector<16xf32>
    %157 = vector.shape_cast %156 : vector<16xf32> to vector<16x1xf32>
    %cst_63 = arith.constant 3.200000e+01 : f32
    %158 = vector.broadcast %cst_63 : f32 to vector<16x1xf32>
    %159 = arith.divf %157, %158 : vector<16x1xf32>
    %160 = vector.broadcast %150 : vector<16x1xf32> to vector<16x32xf32>
    %161 = arith.subf %144, %160 : vector<16x32xf32>
    %cst_64 = arith.constant 9.99999996E-13 : f32
    %162 = vector.broadcast %cst_64 : f32 to vector<16x1xf32>
    %163 = arith.addf %159, %162 : vector<16x1xf32>
    %164 = math.rsqrt %163 : vector<16x1xf32>
    %165 = vector.broadcast %164 : vector<16x1xf32> to vector<16x32xf32>
    %166 = arith.mulf %161, %165 : vector<16x32xf32>
    %167 = vector.broadcast %145 : vector<1x32xf32> to vector<16x32xf32>
    %168 = arith.mulf %166, %167 : vector<16x32xf32>
    %169 = vector.broadcast %146 : vector<1x32xf32> to vector<16x32xf32>
    %170 = arith.addf %168, %169 : vector<16x32xf32>
    %c0_65 = arith.constant 0 : index
    %c0_66 = arith.constant 0 : index
    %c0_67 = arith.constant 0 : index
    %171 = vector.load %arg7[%c0_65, %c0_66, %c0_67] : memref<2x32x64xbf16, #tpu.memory_space<vmem>>, vector<1x32x64xbf16>
    %172 = vector.shape_cast %171 : vector<1x32x64xbf16> to vector<32x64xbf16>
    %c6 = arith.constant 6 : index
    %c0_68 = arith.constant 0 : index
    %173 = vector.load %arg10[%c6, %c0_68] : memref<20x96xf32, #tpu.memory_space<vmem>>, vector<1x64xf32>
    %174 = arith.truncf %170 : vector<16x32xf32> to vector<16x32xbf16>
    %cst_69 = arith.constant dense<0.000000e+00> : vector<16x64xf32>
    %175 = tpu.matmul %174, %172, %cst_69 {dimension_numbers = #tpu.dot_dimension_numbers<[1], [0], [0], [1], [0, 0, 1, 1], [], []>} : vector<16x32xbf16>, vector<32x64xbf16>, vector<16x64xf32> -> vector<16x64xf32>
    %176 = vector.broadcast %173 : vector<1x64xf32> to vector<16x64xf32>
    %177 = arith.addf %175, %176 : vector<16x64xf32>
    %cst_70 = arith.constant 5.000000e-01 : f32
    %178 = vector.broadcast %cst_70 : f32 to vector<16x64xf32>
    %179 = arith.mulf %178, %177 : vector<16x64xf32>
    %cst_71 = arith.constant 4.471500e-02 : f32
    %180 = vector.broadcast %cst_71 : f32 to vector<16x64xf32>
    %181 = arith.mulf %180, %177 : vector<16x64xf32>
    %182 = arith.mulf %181, %177 : vector<16x64xf32>
    %183 = arith.mulf %182, %177 : vector<16x64xf32>
    %184 = arith.addf %177, %183 : vector<16x64xf32>
    %cst_72 = arith.constant 0.797884583 : f32
    %185 = vector.broadcast %cst_72 : f32 to vector<16x64xf32>
    %186 = arith.mulf %185, %184 : vector<16x64xf32>
    %187 = math.tanh %186 : vector<16x64xf32>
    %cst_73 = arith.constant 1.000000e+00 : f32
    %188 = vector.broadcast %cst_73 : f32 to vector<16x64xf32>
    %189 = arith.addf %188, %187 : vector<16x64xf32>
    %190 = arith.mulf %179, %189 : vector<16x64xf32>
    %c0_74 = arith.constant 0 : index
    %c0_75 = arith.constant 0 : index
    %c0_76 = arith.constant 0 : index
    %191 = vector.load %arg8[%c0_74, %c0_75, %c0_76] : memref<2x64x32xbf16, #tpu.memory_space<vmem>>, vector<1x64x32xbf16>
    %192 = vector.shape_cast %191 : vector<1x64x32xbf16> to vector<64x32xbf16>
    %c7 = arith.constant 7 : index
    %c0_77 = arith.constant 0 : index
    %193 = vector.load %arg10[%c7, %c0_77] : memref<20x96xf32, #tpu.memory_space<vmem>>, vector<1x32xf32>
    %194 = arith.truncf %190 : vector<16x64xf32> to vector<16x64xbf16>
    %cst_78 = arith.constant dense<0.000000e+00> : vector<16x32xf32>
    %195 = tpu.matmul %194, %192, %cst_78 {dimension_numbers = #tpu.dot_dimension_numbers<[1], [0], [0], [1], [0, 0, 1, 1], [], []>} : vector<16x64xbf16>, vector<64x32xbf16>, vector<16x32xf32> -> vector<16x32xf32>
    %196 = vector.broadcast %193 : vector<1x32xf32> to vector<16x32xf32>
    %197 = arith.addf %195, %196 : vector<16x32xf32>
    %198 = arith.addf %197, %170 : vector<16x32xf32>
    %c8 = arith.constant 8 : index
    %c0_79 = arith.constant 0 : index
    %199 = vector.load %arg10[%c8, %c0_79] : memref<20x96xf32, #tpu.memory_space<vmem>>, vector<1x32xf32>
    %c9 = arith.constant 9 : index
    %c0_80 = arith.constant 0 : index
    %200 = vector.load %arg10[%c9, %c0_80] : memref<20x96xf32, #tpu.memory_space<vmem>>, vector<1x32xf32>
    %cst_81 = arith.constant dense<0.000000e+00> : vector<16xf32>
    %201 = vector.multi_reduction <add>, %198, %cst_81 [1] : vector<16x32xf32> to vector<16xf32>
    %202 = vector.shape_cast %201 : vector<16xf32> to vector<16x1xf32>
    %cst_82 = arith.constant 3.200000e+01 : f32
    %203 = vector.broadcast %cst_82 : f32 to vector<16x1xf32>
    %204 = arith.divf %202, %203 : vector<16x1xf32>
    %205 = vector.broadcast %204 : vector<16x1xf32> to vector<16x32xf32>
    %206 = arith.subf %198, %205 : vector<16x32xf32>
    %207 = vector.broadcast %204 : vector<16x1xf32> to vector<16x32xf32>
    %208 = arith.subf %198, %207 : vector<16x32xf32>
    %209 = arith.mulf %206, %208 : vector<16x32xf32>
    %cst_83 = arith.constant dense<0.000000e+00> : vector<16xf32>
    %210 = vector.multi_reduction <add>, %209, %cst_83 [1] : vector<16x32xf32> to vector<16xf32>
    %211 = vector.shape_cast %210 : vector<16xf32> to vector<16x1xf32>
    %cst_84 = arith.constant 3.200000e+01 : f32
    %212 = vector.broadcast %cst_84 : f32 to vector<16x1xf32>
    %213 = arith.divf %211, %212 : vector<16x1xf32>
    %214 = vector.broadcast %204 : vector<16x1xf32> to vector<16x32xf32>
    %215 = arith.subf %198, %214 : vector<16x32xf32>
    %cst_85 = arith.constant 9.99999996E-13 : f32
    %216 = vector.broadcast %cst_85 : f32 to vector<16x1xf32>
    %217 = arith.addf %213, %216 : vector<16x1xf32>
    %218 = math.rsqrt %217 : vector<16x1xf32>
    %219 = vector.broadcast %218 : vector<16x1xf32> to vector<16x32xf32>
    %220 = arith.mulf %215, %219 : vector<16x32xf32>
    %221 = vector.broadcast %199 : vector<1x32xf32> to vector<16x32xf32>
    %222 = arith.mulf %220, %221 : vector<16x32xf32>
    %223 = vector.broadcast %200 : vector<1x32xf32> to vector<16x32xf32>
    %224 = arith.addf %222, %223 : vector<16x32xf32>
    %c1_86 = arith.constant 1 : index
    %c0_87 = arith.constant 0 : index
    %c0_88 = arith.constant 0 : index
    %225 = vector.load %arg5[%c1_86, %c0_87, %c0_88] : memref<2x32x96xbf16, #tpu.memory_space<vmem>>, vector<1x32x96xbf16>
    %226 = vector.shape_cast %225 : vector<1x32x96xbf16> to vector<32x96xbf16>
    %c10 = arith.constant 10 : index
    %c0_89 = arith.constant 0 : index
    %227 = vector.load %arg10[%c10, %c0_89] : memref<20x96xf32, #tpu.memory_space<vmem>>, vector<1x96xf32>
    %228 = arith.truncf %224 : vector<16x32xf32> to vector<16x32xbf16>
    %cst_90 = arith.constant dense<0.000000e+00> : vector<16x96xf32>
    %229 = tpu.matmul %228, %226, %cst_90 {dimension_numbers = #tpu.dot_dimension_numbers<[1], [0], [0], [1], [0, 0, 1, 1], [], []>} : vector<16x32xbf16>, vector<32x96xbf16>, vector<16x96xf32> -> vector<16x96xf32>
    %230 = vector.broadcast %227 : vector<1x96xf32> to vector<16x96xf32>
    %231 = arith.addf %229, %230 : vector<16x96xf32>
    %cst_91 = arith.constant 0.000000e+00 : f32
    %232 = vector.broadcast %cst_91 : f32 to vector<16x32xf32>
    %233 = vector.extract_strided_slice %231 {offsets = [0, 0], sizes = [16, 8], strides = [1, 1]} : vector<16x96xf32> to vector<16x8xf32>
    %234 = arith.truncf %233 : vector<16x8xf32> to vector<16x8xbf16>
    %235 = vector.extract_strided_slice %231 {offsets = [0, 32], sizes = [16, 8], strides = [1, 1]} : vector<16x96xf32> to vector<16x8xf32>
    %236 = arith.truncf %235 : vector<16x8xf32> to vector<16x8xbf16>
    %237 = vector.extract_strided_slice %231 {offsets = [0, 64], sizes = [16, 8], strides = [1, 1]} : vector<16x96xf32> to vector<16x8xf32>
    %238 = arith.truncf %237 : vector<16x8xf32> to vector<16x8xbf16>
    "tpu.trace_start"() <{level = 10 : i32, message = "qd,kd->qk"}> : () -> ()
    %cst_92 = arith.constant dense<0.000000e+00> : vector<16x16xf32>
    %239 = tpu.matmul %234, %236, %cst_92 {dimension_numbers = #tpu.dot_dimension_numbers<[1], [1], [0], [0], [0, 0, 1, 0], [], []>} : vector<16x8xbf16>, vector<16x8xbf16>, vector<16x16xf32> -> vector<16x16xf32>
    "tpu.trace_stop"() : () -> ()
    %240 = arith.addf %239, %36 : vector<16x16xf32>
    %cst_93 = arith.constant dense<0xFF800000> : vector<16xf32>
    %241 = vector.multi_reduction <maximumf>, %240, %cst_93 [1] : vector<16x16xf32> to vector<16xf32>
    %242 = vector.shape_cast %241 : vector<16xf32> to vector<16x1xf32>
    %243 = vector.broadcast %242 : vector<16x1xf32> to vector<16x16xf32>
    %244 = arith.subf %240, %243 : vector<16x16xf32>
    %245 = math.exp %244 : vector<16x16xf32>
    %cst_94 = arith.constant dense<0.000000e+00> : vector<16xf32>
    %246 = vector.multi_reduction <add>, %245, %cst_94 [1] : vector<16x16xf32> to vector<16xf32>
    %247 = vector.shape_cast %246 : vector<16xf32> to vector<16x1xf32>
    %248 = vector.broadcast %247 : vector<16x1xf32> to vector<16x16xf32>
    %249 = arith.divf %245, %248 : vector<16x16xf32>
    %250 = arith.truncf %249 : vector<16x16xf32> to vector<16x16xbf16>
    %cst_95 = arith.constant dense<0.000000e+00> : vector<16x8xf32>
    %251 = tpu.matmul %250, %238, %cst_95 {dimension_numbers = #tpu.dot_dimension_numbers<[1], [0], [0], [1], [0, 0, 1, 1], [], []>} : vector<16x16xbf16>, vector<16x8xbf16>, vector<16x8xf32> -> vector<16x8xf32>
    %252 = arith.truncf %251 : vector<16x8xf32> to vector<16x8xbf16>
    %c1_96 = arith.constant 1 : index
    %c0_97 = arith.constant 0 : index
    %c0_98 = arith.constant 0 : index
    %c0_99 = arith.constant 0 : index
    %253 = vector.load %arg6[%c1_96, %c0_97, %c0_98, %c0_99] : memref<2x4x8x32xbf16, #tpu.memory_space<vmem>>, vector<1x1x8x32xbf16>
    %254 = vector.shape_cast %253 : vector<1x1x8x32xbf16> to vector<8x32xbf16>
    %cst_100 = arith.constant dense<0.000000e+00> : vector<16x32xf32>
    %255 = tpu.matmul %252, %254, %cst_100 {dimension_numbers = #tpu.dot_dimension_numbers<[1], [0], [0], [1], [0, 0, 1, 1], [], []>} : vector<16x8xbf16>, vector<8x32xbf16>, vector<16x32xf32> -> vector<16x32xf32>
    %256 = arith.addf %232, %255 : vector<16x32xf32>
    %257 = vector.extract_strided_slice %231 {offsets = [0, 8], sizes = [16, 8], strides = [1, 1]} : vector<16x96xf32> to vector<16x8xf32>
    %258 = arith.truncf %257 : vector<16x8xf32> to vector<16x8xbf16>
    %259 = vector.extract_strided_slice %231 {offsets = [0, 40], sizes = [16, 8], strides = [1, 1]} : vector<16x96xf32> to vector<16x8xf32>
    %260 = arith.truncf %259 : vector<16x8xf32> to vector<16x8xbf16>
    %261 = vector.extract_strided_slice %231 {offsets = [0, 72], sizes = [16, 8], strides = [1, 1]} : vector<16x96xf32> to vector<16x8xf32>
    %262 = arith.truncf %261 : vector<16x8xf32> to vector<16x8xbf16>
    "tpu.trace_start"() <{level = 10 : i32, message = "qd,kd->qk"}> : () -> ()
    %cst_101 = arith.constant dense<0.000000e+00> : vector<16x16xf32>
    %263 = tpu.matmul %258, %260, %cst_101 {dimension_numbers = #tpu.dot_dimension_numbers<[1], [1], [0], [0], [0, 0, 1, 0], [], []>} : vector<16x8xbf16>, vector<16x8xbf16>, vector<16x16xf32> -> vector<16x16xf32>
    "tpu.trace_stop"() : () -> ()
    %264 = arith.addf %263, %36 : vector<16x16xf32>
    %cst_102 = arith.constant dense<0xFF800000> : vector<16xf32>
    %265 = vector.multi_reduction <maximumf>, %264, %cst_102 [1] : vector<16x16xf32> to vector<16xf32>
    %266 = vector.shape_cast %265 : vector<16xf32> to vector<16x1xf32>
    %267 = vector.broadcast %266 : vector<16x1xf32> to vector<16x16xf32>
    %268 = arith.subf %264, %267 : vector<16x16xf32>
    %269 = math.exp %268 : vector<16x16xf32>
    %cst_103 = arith.constant dense<0.000000e+00> : vector<16xf32>
    %270 = vector.multi_reduction <add>, %269, %cst_103 [1] : vector<16x16xf32> to vector<16xf32>
    %271 = vector.shape_cast %270 : vector<16xf32> to vector<16x1xf32>
    %272 = vector.broadcast %271 : vector<16x1xf32> to vector<16x16xf32>
    %273 = arith.divf %269, %272 : vector<16x16xf32>
    %274 = arith.truncf %273 : vector<16x16xf32> to vector<16x16xbf16>
    %cst_104 = arith.constant dense<0.000000e+00> : vector<16x8xf32>
    %275 = tpu.matmul %274, %262, %cst_104 {dimension_numbers = #tpu.dot_dimension_numbers<[1], [0], [0], [1], [0, 0, 1, 1], [], []>} : vector<16x16xbf16>, vector<16x8xbf16>, vector<16x8xf32> -> vector<16x8xf32>
    %276 = arith.truncf %275 : vector<16x8xf32> to vector<16x8xbf16>
    %c1_105 = arith.constant 1 : index
    %c1_106 = arith.constant 1 : index
    %c0_107 = arith.constant 0 : index
    %c0_108 = arith.constant 0 : index
    %277 = vector.load %arg6[%c1_105, %c1_106, %c0_107, %c0_108] : memref<2x4x8x32xbf16, #tpu.memory_space<vmem>>, vector<1x1x8x32xbf16>
    %278 = vector.shape_cast %277 : vector<1x1x8x32xbf16> to vector<8x32xbf16>
    %cst_109 = arith.constant dense<0.000000e+00> : vector<16x32xf32>
    %279 = tpu.matmul %276, %278, %cst_109 {dimension_numbers = #tpu.dot_dimension_numbers<[1], [0], [0], [1], [0, 0, 1, 1], [], []>} : vector<16x8xbf16>, vector<8x32xbf16>, vector<16x32xf32> -> vector<16x32xf32>
    %280 = arith.addf %256, %279 : vector<16x32xf32>
    %281 = vector.extract_strided_slice %231 {offsets = [0, 16], sizes = [16, 8], strides = [1, 1]} : vector<16x96xf32> to vector<16x8xf32>
    %282 = arith.truncf %281 : vector<16x8xf32> to vector<16x8xbf16>
    %283 = vector.extract_strided_slice %231 {offsets = [0, 48], sizes = [16, 8], strides = [1, 1]} : vector<16x96xf32> to vector<16x8xf32>
    %284 = arith.truncf %283 : vector<16x8xf32> to vector<16x8xbf16>
    %285 = vector.extract_strided_slice %231 {offsets = [0, 80], sizes = [16, 8], strides = [1, 1]} : vector<16x96xf32> to vector<16x8xf32>
    %286 = arith.truncf %285 : vector<16x8xf32> to vector<16x8xbf16>
    "tpu.trace_start"() <{level = 10 : i32, message = "qd,kd->qk"}> : () -> ()
    %cst_110 = arith.constant dense<0.000000e+00> : vector<16x16xf32>
    %287 = tpu.matmul %282, %284, %cst_110 {dimension_numbers = #tpu.dot_dimension_numbers<[1], [1], [0], [0], [0, 0, 1, 0], [], []>} : vector<16x8xbf16>, vector<16x8xbf16>, vector<16x16xf32> -> vector<16x16xf32>
    "tpu.trace_stop"() : () -> ()
    %288 = arith.addf %287, %36 : vector<16x16xf32>
    %cst_111 = arith.constant dense<0xFF800000> : vector<16xf32>
    %289 = vector.multi_reduction <maximumf>, %288, %cst_111 [1] : vector<16x16xf32> to vector<16xf32>
    %290 = vector.shape_cast %289 : vector<16xf32> to vector<16x1xf32>
    %291 = vector.broadcast %290 : vector<16x1xf32> to vector<16x16xf32>
    %292 = arith.subf %288, %291 : vector<16x16xf32>
    %293 = math.exp %292 : vector<16x16xf32>
    %cst_112 = arith.constant dense<0.000000e+00> : vector<16xf32>
    %294 = vector.multi_reduction <add>, %293, %cst_112 [1] : vector<16x16xf32> to vector<16xf32>
    %295 = vector.shape_cast %294 : vector<16xf32> to vector<16x1xf32>
    %296 = vector.broadcast %295 : vector<16x1xf32> to vector<16x16xf32>
    %297 = arith.divf %293, %296 : vector<16x16xf32>
    %298 = arith.truncf %297 : vector<16x16xf32> to vector<16x16xbf16>
    %cst_113 = arith.constant dense<0.000000e+00> : vector<16x8xf32>
    %299 = tpu.matmul %298, %286, %cst_113 {dimension_numbers = #tpu.dot_dimension_numbers<[1], [0], [0], [1], [0, 0, 1, 1], [], []>} : vector<16x16xbf16>, vector<16x8xbf16>, vector<16x8xf32> -> vector<16x8xf32>
    %300 = arith.truncf %299 : vector<16x8xf32> to vector<16x8xbf16>
    %c1_114 = arith.constant 1 : index
    %c2_115 = arith.constant 2 : index
    %c0_116 = arith.constant 0 : index
    %c0_117 = arith.constant 0 : index
    %301 = vector.load %arg6[%c1_114, %c2_115, %c0_116, %c0_117] : memref<2x4x8x32xbf16, #tpu.memory_space<vmem>>, vector<1x1x8x32xbf16>
    %302 = vector.shape_cast %301 : vector<1x1x8x32xbf16> to vector<8x32xbf16>
    %cst_118 = arith.constant dense<0.000000e+00> : vector<16x32xf32>
    %303 = tpu.matmul %300, %302, %cst_118 {dimension_numbers = #tpu.dot_dimension_numbers<[1], [0], [0], [1], [0, 0, 1, 1], [], []>} : vector<16x8xbf16>, vector<8x32xbf16>, vector<16x32xf32> -> vector<16x32xf32>
    %304 = arith.addf %280, %303 : vector<16x32xf32>
    %305 = vector.extract_strided_slice %231 {offsets = [0, 24], sizes = [16, 8], strides = [1, 1]} : vector<16x96xf32> to vector<16x8xf32>
    %306 = arith.truncf %305 : vector<16x8xf32> to vector<16x8xbf16>
    %307 = vector.extract_strided_slice %231 {offsets = [0, 56], sizes = [16, 8], strides = [1, 1]} : vector<16x96xf32> to vector<16x8xf32>
    %308 = arith.truncf %307 : vector<16x8xf32> to vector<16x8xbf16>
    %309 = vector.extract_strided_slice %231 {offsets = [0, 88], sizes = [16, 8], strides = [1, 1]} : vector<16x96xf32> to vector<16x8xf32>
    %310 = arith.truncf %309 : vector<16x8xf32> to vector<16x8xbf16>
    "tpu.trace_start"() <{level = 10 : i32, message = "qd,kd->qk"}> : () -> ()
    %cst_119 = arith.constant dense<0.000000e+00> : vector<16x16xf32>
    %311 = tpu.matmul %306, %308, %cst_119 {dimension_numbers = #tpu.dot_dimension_numbers<[1], [1], [0], [0], [0, 0, 1, 0], [], []>} : vector<16x8xbf16>, vector<16x8xbf16>, vector<16x16xf32> -> vector<16x16xf32>
    "tpu.trace_stop"() : () -> ()
    %312 = arith.addf %311, %36 : vector<16x16xf32>
    %cst_120 = arith.constant dense<0xFF800000> : vector<16xf32>
    %313 = vector.multi_reduction <maximumf>, %312, %cst_120 [1] : vector<16x16xf32> to vector<16xf32>
    %314 = vector.shape_cast %313 : vector<16xf32> to vector<16x1xf32>
    %315 = vector.broadcast %314 : vector<16x1xf32> to vector<16x16xf32>
    %316 = arith.subf %312, %315 : vector<16x16xf32>
    %317 = math.exp %316 : vector<16x16xf32>
    %cst_121 = arith.constant dense<0.000000e+00> : vector<16xf32>
    %318 = vector.multi_reduction <add>, %317, %cst_121 [1] : vector<16x16xf32> to vector<16xf32>
    %319 = vector.shape_cast %318 : vector<16xf32> to vector<16x1xf32>
    %320 = vector.broadcast %319 : vector<16x1xf32> to vector<16x16xf32>
    %321 = arith.divf %317, %320 : vector<16x16xf32>
    %322 = arith.truncf %321 : vector<16x16xf32> to vector<16x16xbf16>
    %cst_122 = arith.constant dense<0.000000e+00> : vector<16x8xf32>
    %323 = tpu.matmul %322, %310, %cst_122 {dimension_numbers = #tpu.dot_dimension_numbers<[1], [0], [0], [1], [0, 0, 1, 1], [], []>} : vector<16x16xbf16>, vector<16x8xbf16>, vector<16x8xf32> -> vector<16x8xf32>
    %324 = arith.truncf %323 : vector<16x8xf32> to vector<16x8xbf16>
    %c1_123 = arith.constant 1 : index
    %c3_124 = arith.constant 3 : index
    %c0_125 = arith.constant 0 : index
    %c0_126 = arith.constant 0 : index
    %325 = vector.load %arg6[%c1_123, %c3_124, %c0_125, %c0_126] : memref<2x4x8x32xbf16, #tpu.memory_space<vmem>>, vector<1x1x8x32xbf16>
    %326 = vector.shape_cast %325 : vector<1x1x8x32xbf16> to vector<8x32xbf16>
    %cst_127 = arith.constant dense<0.000000e+00> : vector<16x32xf32>
    %327 = tpu.matmul %324, %326, %cst_127 {dimension_numbers = #tpu.dot_dimension_numbers<[1], [0], [0], [1], [0, 0, 1, 1], [], []>} : vector<16x8xbf16>, vector<8x32xbf16>, vector<16x32xf32> -> vector<16x32xf32>
    %328 = arith.addf %304, %327 : vector<16x32xf32>
    %c11 = arith.constant 11 : index
    %c0_128 = arith.constant 0 : index
    %329 = vector.load %arg10[%c11, %c0_128] : memref<20x96xf32, #tpu.memory_space<vmem>>, vector<1x32xf32>
    %330 = vector.broadcast %329 : vector<1x32xf32> to vector<16x32xf32>
    %331 = arith.addf %328, %330 : vector<16x32xf32>
    %332 = arith.addf %331, %224 : vector<16x32xf32>
    %c12 = arith.constant 12 : index
    %c0_129 = arith.constant 0 : index
    %333 = vector.load %arg10[%c12, %c0_129] : memref<20x96xf32, #tpu.memory_space<vmem>>, vector<1x32xf32>
    %c13 = arith.constant 13 : index
    %c0_130 = arith.constant 0 : index
    %334 = vector.load %arg10[%c13, %c0_130] : memref<20x96xf32, #tpu.memory_space<vmem>>, vector<1x32xf32>
    %cst_131 = arith.constant dense<0.000000e+00> : vector<16xf32>
    %335 = vector.multi_reduction <add>, %332, %cst_131 [1] : vector<16x32xf32> to vector<16xf32>
    %336 = vector.shape_cast %335 : vector<16xf32> to vector<16x1xf32>
    %cst_132 = arith.constant 3.200000e+01 : f32
    %337 = vector.broadcast %cst_132 : f32 to vector<16x1xf32>
    %338 = arith.divf %336, %337 : vector<16x1xf32>
    %339 = vector.broadcast %338 : vector<16x1xf32> to vector<16x32xf32>
    %340 = arith.subf %332, %339 : vector<16x32xf32>
    %341 = vector.broadcast %338 : vector<16x1xf32> to vector<16x32xf32>
    %342 = arith.subf %332, %341 : vector<16x32xf32>
    %343 = arith.mulf %340, %342 : vector<16x32xf32>
    %cst_133 = arith.constant dense<0.000000e+00> : vector<16xf32>
    %344 = vector.multi_reduction <add>, %343, %cst_133 [1] : vector<16x32xf32> to vector<16xf32>
    %345 = vector.shape_cast %344 : vector<16xf32> to vector<16x1xf32>
    %cst_134 = arith.constant 3.200000e+01 : f32
    %346 = vector.broadcast %cst_134 : f32 to vector<16x1xf32>
    %347 = arith.divf %345, %346 : vector<16x1xf32>
    %348 = vector.broadcast %338 : vector<16x1xf32> to vector<16x32xf32>
    %349 = arith.subf %332, %348 : vector<16x32xf32>
    %cst_135 = arith.constant 9.99999996E-13 : f32
    %350 = vector.broadcast %cst_135 : f32 to vector<16x1xf32>
    %351 = arith.addf %347, %350 : vector<16x1xf32>
    %352 = math.rsqrt %351 : vector<16x1xf32>
    %353 = vector.broadcast %352 : vector<16x1xf32> to vector<16x32xf32>
    %354 = arith.mulf %349, %353 : vector<16x32xf32>
    %355 = vector.broadcast %333 : vector<1x32xf32> to vector<16x32xf32>
    %356 = arith.mulf %354, %355 : vector<16x32xf32>
    %357 = vector.broadcast %334 : vector<1x32xf32> to vector<16x32xf32>
    %358 = arith.addf %356, %357 : vector<16x32xf32>
    %c1_136 = arith.constant 1 : index
    %c0_137 = arith.constant 0 : index
    %c0_138 = arith.constant 0 : index
    %359 = vector.load %arg7[%c1_136, %c0_137, %c0_138] : memref<2x32x64xbf16, #tpu.memory_space<vmem>>, vector<1x32x64xbf16>
    %360 = vector.shape_cast %359 : vector<1x32x64xbf16> to vector<32x64xbf16>
    %c14 = arith.constant 14 : index
    %c0_139 = arith.constant 0 : index
    %361 = vector.load %arg10[%c14, %c0_139] : memref<20x96xf32, #tpu.memory_space<vmem>>, vector<1x64xf32>
    %362 = arith.truncf %358 : vector<16x32xf32> to vector<16x32xbf16>
    %cst_140 = arith.constant dense<0.000000e+00> : vector<16x64xf32>
    %363 = tpu.matmul %362, %360, %cst_140 {dimension_numbers = #tpu.dot_dimension_numbers<[1], [0], [0], [1], [0, 0, 1, 1], [], []>} : vector<16x32xbf16>, vector<32x64xbf16>, vector<16x64xf32> -> vector<16x64xf32>
    %364 = vector.broadcast %361 : vector<1x64xf32> to vector<16x64xf32>
    %365 = arith.addf %363, %364 : vector<16x64xf32>
    %cst_141 = arith.constant 5.000000e-01 : f32
    %366 = vector.broadcast %cst_141 : f32 to vector<16x64xf32>
    %367 = arith.mulf %366, %365 : vector<16x64xf32>
    %cst_142 = arith.constant 4.471500e-02 : f32
    %368 = vector.broadcast %cst_142 : f32 to vector<16x64xf32>
    %369 = arith.mulf %368, %365 : vector<16x64xf32>
    %370 = arith.mulf %369, %365 : vector<16x64xf32>
    %371 = arith.mulf %370, %365 : vector<16x64xf32>
    %372 = arith.addf %365, %371 : vector<16x64xf32>
    %cst_143 = arith.constant 0.797884583 : f32
    %373 = vector.broadcast %cst_143 : f32 to vector<16x64xf32>
    %374 = arith.mulf %373, %372 : vector<16x64xf32>
    %375 = math.tanh %374 : vector<16x64xf32>
    %cst_144 = arith.constant 1.000000e+00 : f32
    %376 = vector.broadcast %cst_144 : f32 to vector<16x64xf32>
    %377 = arith.addf %376, %375 : vector<16x64xf32>
    %378 = arith.mulf %367, %377 : vector<16x64xf32>
    %c1_145 = arith.constant 1 : index
    %c0_146 = arith.constant 0 : index
    %c0_147 = arith.constant 0 : index
    %379 = vector.load %arg8[%c1_145, %c0_146, %c0_147] : memref<2x64x32xbf16, #tpu.memory_space<vmem>>, vector<1x64x32xbf16>
    %380 = vector.shape_cast %379 : vector<1x64x32xbf16> to vector<64x32xbf16>
    %c15 = arith.constant 15 : index
    %c0_148 = arith.constant 0 : index
    %381 = vector.load %arg10[%c15, %c0_148] : memref<20x96xf32, #tpu.memory_space<vmem>>, vector<1x32xf32>
    %382 = arith.truncf %378 : vector<16x64xf32> to vector<16x64xbf16>
    %cst_149 = arith.constant dense<0.000000e+00> : vector<16x32xf32>
    %383 = tpu.matmul %382, %380, %cst_149 {dimension_numbers = #tpu.dot_dimension_numbers<[1], [0], [0], [1], [0, 0, 1, 1], [], []>} : vector<16x64xbf16>, vector<64x32xbf16>, vector<16x32xf32> -> vector<16x32xf32>
    %384 = vector.broadcast %381 : vector<1x32xf32> to vector<16x32xf32>
    %385 = arith.addf %383, %384 : vector<16x32xf32>
    %386 = arith.addf %385, %358 : vector<16x32xf32>
    %c16 = arith.constant 16 : index
    %c0_150 = arith.constant 0 : index
    %387 = vector.load %arg10[%c16, %c0_150] : memref<20x96xf32, #tpu.memory_space<vmem>>, vector<1x32xf32>
    %c17 = arith.constant 17 : index
    %c0_151 = arith.constant 0 : index
    %388 = vector.load %arg10[%c17, %c0_151] : memref<20x96xf32, #tpu.memory_space<vmem>>, vector<1x32xf32>
    %cst_152 = arith.constant dense<0.000000e+00> : vector<16xf32>
    %389 = vector.multi_reduction <add>, %386, %cst_152 [1] : vector<16x32xf32> to vector<16xf32>
    %390 = vector.shape_cast %389 : vector<16xf32> to vector<16x1xf32>
    %cst_153 = arith.constant 3.200000e+01 : f32
    %391 = vector.broadcast %cst_153 : f32 to vector<16x1xf32>
    %392 = arith.divf %390, %391 : vector<16x1xf32>
    %393 = vector.broadcast %392 : vector<16x1xf32> to vector<16x32xf32>
    %394 = arith.subf %386, %393 : vector<16x32xf32>
    %395 = vector.broadcast %392 : vector<16x1xf32> to vector<16x32xf32>
    %396 = arith.subf %386, %395 : vector<16x32xf32>
    %397 = arith.mulf %394, %396 : vector<16x32xf32>
    %cst_154 = arith.constant dense<0.000000e+00> : vector<16xf32>
    %398 = vector.multi_reduction <add>, %397, %cst_154 [1] : vector<16x32xf32> to vector<16xf32>
    %399 = vector.shape_cast %398 : vector<16xf32> to vector<16x1xf32>
    %cst_155 = arith.constant 3.200000e+01 : f32
    %400 = vector.broadcast %cst_155 : f32 to vector<16x1xf32>
    %401 = arith.divf %399, %400 : vector<16x1xf32>
    %402 = vector.broadcast %392 : vector<16x1xf32> to vector<16x32xf32>
    %403 = arith.subf %386, %402 : vector<16x32xf32>
    %cst_156 = arith.constant 9.99999996E-13 : f32
    %404 = vector.broadcast %cst_156 : f32 to vector<16x1xf32>
    %405 = arith.addf %401, %404 : vector<16x1xf32>
    %406 = math.rsqrt %405 : vector<16x1xf32>
    %407 = vector.broadcast %406 : vector<16x1xf32> to vector<16x32xf32>
    %408 = arith.mulf %403, %407 : vector<16x32xf32>
    %409 = vector.broadcast %387 : vector<1x32xf32> to vector<16x32xf32>
    %410 = arith.mulf %408, %409 : vector<16x32xf32>
    %411 = vector.broadcast %388 : vector<1x32xf32> to vector<16x32xf32>
    %412 = arith.addf %410, %411 : vector<16x32xf32>
    %413 = vector.extract_strided_slice %412 {offsets = [0, 0], sizes = [1, 32], strides = [1, 1]} : vector<16x32xf32> to vector<1x32xf32>
    %414 = vector.extract_strided_slice %412 {offsets = [8, 0], sizes = [1, 32], strides = [1, 1]} : vector<16x32xf32> to vector<1x32xf32>
    %415 = tpu.concatenate %413, %414 in 0 : vector<1x32xf32>, vector<1x32xf32> -> vector<2x32xf32>
    %c0_157 = arith.constant 0 : index
    %c0_158 = arith.constant 0 : index
    %416 = vector.load %arg9[%c0_157, %c0_158] : memref<32x34xbf16, #tpu.memory_space<vmem>>, vector<32x32xbf16>
    %c18 = arith.constant 18 : index
    %c0_159 = arith.constant 0 : index
    %417 = vector.load %arg10[%c18, %c0_159] : memref<20x96xf32, #tpu.memory_space<vmem>>, vector<1x32xf32>
    %418 = arith.truncf %415 : vector<2x32xf32> to vector<2x32xbf16>
    %cst_160 = arith.constant dense<0.000000e+00> : vector<2x32xf32>
    %419 = tpu.matmul %418, %416, %cst_160 {dimension_numbers = #tpu.dot_dimension_numbers<[1], [0], [0], [1], [0, 0, 1, 1], [], []>} : vector<2x32xbf16>, vector<32x32xbf16>, vector<2x32xf32> -> vector<2x32xf32>
    %420 = vector.broadcast %417 : vector<1x32xf32> to vector<2x32xf32>
    %421 = arith.addf %419, %420 : vector<2x32xf32>
    %422 = math.tanh %421 : vector<2x32xf32>
    %c0_161 = arith.constant 0 : index
    %c32 = arith.constant 32 : index
    %423 = vector.load %arg9[%c0_161, %c32] : memref<32x34xbf16, #tpu.memory_space<vmem>>, vector<32x2xbf16>
    %c19 = arith.constant 19 : index
    %c0_162 = arith.constant 0 : index
    %424 = vector.load %arg10[%c19, %c0_162] : memref<20x96xf32, #tpu.memory_space<vmem>>, vector<1x2xf32>
    %425 = arith.truncf %422 : vector<2x32xf32> to vector<2x32xbf16>
    %cst_163 = arith.constant dense<0.000000e+00> : vector<2x2xf32>
    %426 = tpu.matmul %425, %423, %cst_163 {dimension_numbers = #tpu.dot_dimension_numbers<[1], [0], [0], [1], [0, 0, 1, 1], [], []>} : vector<2x32xbf16>, vector<32x2xbf16>, vector<2x2xf32> -> vector<2x2xf32>
    %427 = vector.broadcast %424 : vector<1x2xf32> to vector<2x2xf32>
    %428 = arith.addf %426, %427 : vector<2x2xf32>
    %c0_164 = arith.constant 0 : index
    %c0_165 = arith.constant 0 : index
    %429 = vector.load %arg11[%c0_164, %c0_165] : memref<2x2xf32, #tpu.memory_space<vmem>>, vector<2x2xf32>
    tpu.vector_store %arg11[%c0_164, %c0_165], %428 {strides = array<i32>} : memref<2x2xf32, #tpu.memory_space<vmem>>, vector<2x2xf32>,
    return
  }
  func.func @transform_0(%arg0: i32) -> (i32, i32) {
    %c0_i32 = arith.constant 0 : i32
    %c0_i32_0 = arith.constant 0 : i32
    %c0_i32_1 = arith.constant 0 : i32
    return %c0_i32, %c0_i32_0 : i32, i32
  }
  func.func @transform_1(%arg0: i32) -> (i32, i32) {
    %c0_i32 = arith.constant 0 : i32
    %c0_i32_0 = arith.constant 0 : i32
    %c0_i32_1 = arith.constant 0 : i32
    return %c0_i32, %c0_i32_0 : i32, i32
  }
  func.func @transform_2(%arg0: i32) -> (i32, i32) {
    %c0_i32 = arith.constant 0 : i32
    %c0_i32_0 = arith.constant 0 : i32
    %c0_i32_1 = arith.constant 0 : i32
    return %c0_i32, %c0_i32_0 : i32, i32
  }
  func.func @transform_3(%arg0: i32) -> (i32, i32) {
    %c0_i32 = arith.constant 0 : i32
    %c0_i32_0 = arith.constant 0 : i32
    %c0_i32_1 = arith.constant 0 : i32
    return %c0_i32, %c0_i32_0 : i32, i32
  }
  func.func @transform_4(%arg0: i32) -> (i32, i32, i32) {
    %c0_i32 = arith.constant 0 : i32
    %c0_i32_0 = arith.constant 0 : i32
    %c0_i32_1 = arith.constant 0 : i32
    %c0_i32_2 = arith.constant 0 : i32
    return %c0_i32, %c0_i32_0, %c0_i32_1 : i32, i32, i32
  }
  func.func @transform_5(%arg0: i32) -> (i32, i32, i32, i32) {
    %c0_i32 = arith.constant 0 : i32
    %c0_i32_0 = arith.constant 0 : i32
    %c0_i32_1 = arith.constant 0 : i32
    %c0_i32_2 = arith.constant 0 : i32
    %c0_i32_3 = arith.constant 0 : i32
    return %c0_i32, %c0_i32_0, %c0_i32_1, %c0_i32_2 : i32, i32, i32, i32
  }
  func.func @transform_6(%arg0: i32) -> (i32, i32, i32) {
    %c0_i32 = arith.constant 0 : i32
    %c0_i32_0 = arith.constant 0 : i32
    %c0_i32_1 = arith.constant 0 : i32
    %c0_i32_2 = arith.constant 0 : i32
    return %c0_i32, %c0_i32_0, %c0_i32_1 : i32, i32, i32
  }
  func.func @transform_7(%arg0: i32) -> (i32, i32, i32) {
    %c0_i32 = arith.constant 0 : i32
    %c0_i32_0 = arith.constant 0 : i32
    %c0_i32_1 = arith.constant 0 : i32
    %c0_i32_2 = arith.constant 0 : i32
    return %c0_i32, %c0_i32_0, %c0_i32_1 : i32, i32, i32
  }
  func.func @transform_8(%arg0: i32) -> (i32, i32) {
    %c0_i32 = arith.constant 0 : i32
    %c0_i32_0 = arith.constant 0 : i32
    %c0_i32_1 = arith.constant 0 : i32
    return %c0_i32, %c0_i32_0 : i32, i32
  }
  func.func @transform_9(%arg0: i32) -> (i32, i32) {
    %c0_i32 = arith.constant 0 : i32
    %c0_i32_0 = arith.constant 0 : i32
    %c0_i32_1 = arith.constant 0 : i32
    return %c0_i32, %c0_i32_0 : i32, i32
  }
  func.func @transform_10(%arg0: i32) -> (i32, i32) {
    %c0_i32 = arith.constant 0 : i32
    %c0_i32_0 = arith.constant 0 : i32
    %c0_i32_1 = arith.constant 0 : i32
    return %c0_i32, %c0_i32_0 : i32, i32
  }
}

</mosaic_0001>

<llo_original>
// kernel: eq.8
$region0: #{eq.8}
  %s0 = inlined_call_operand.vmem [shape: s32[2,8], index: 0, kind: input, shape index: {}]
  %s1 = inlined_call_operand.vmem [shape: s32[16], index: 1, kind: output, shape index: {}]
  $region1: #{eq.8} parent=0
    #allocation0 [shape = 'u8[4096]{0}', space=vmem, size = 0x1000, scoped, tag = 'scoped mem for output reshape']
    #allocation1 [shape = 'u8[4096]{0}', space=vmem, size = 0x1000, scoped, tag = 'scoped mem for input reshape']
    %s3 = ssub.s32 4, 1
    %v4 = vld [vmem:[%s0] sm:%s3]
    %5 = vst [vmem:[#allocation1] sm:%s3] %v4
    %v6 = vld [vmem:[#allocation1] sm:$0x1]
    %vm7 = vcmask 64512
    %8 = vst.msk [vmem:[#allocation0] sm:$0x1] %vm7, %v6
    %s9 = scalar_lea.vmem [#allocation1], 1
    %v10 = vld [vmem:[%s9] sm:$0x1]
    %11 = vrot.lane.b32.xlu0 %v10, 8
    %v12 = vpop.permute.xlu0 %11
    %vm13 = vcmask 130112
    %14 = vst.msk [vmem:[#allocation0] sm:$0x1] %vm13, %v12
    %s16 = ssub.s32 2, 1
    %v17 = vld [vmem:[#allocation0] sm:%s16]
    %s19 = ssub.s32 2, 1
    %20 = vst [vmem:[%s1] sm:%s19] %v17

// kernel: bert_news_classifier.1
$region0: #{bert_news_classifier.1}
  #allocation0 [shape = 'u32[]', space=smem, size = 0x4, offset = 0x4, fixed_abs, tag = 'smem constant byte address 0x4 - core index']
  #allocation1 [shape = 'u32[72,128]{1,0:T(1,128)}', space=vmem, size = 0x9000, scoped, tag = 'internal scratch']
  %s0 = inlined_call_operand.vmem [shape: s32[16,1], index: 0, kind: input, shape index: {}]
  %s1 = inlined_call_operand.vmem [shape: f32[16,16], index: 1, kind: input, shape index: {}]
  %s2 = inlined_call_operand.vmem [shape: f32[100,32], index: 2, kind: input, shape index: {}]
  %s3 = inlined_call_operand.vmem [shape: f32[16,32], index: 3, kind: input, shape index: {}]
  %s4 = inlined_call_operand.vmem [shape: bf16[2,32,96], index: 4, kind: input, shape index: {}]
  %s5 = inlined_call_operand.vmem [shape: bf16[2,4,8,32], index: 5, kind: input, shape index: {}]
  %s6 = inlined_call_operand.vmem [shape: bf16[2,32,64], index: 6, kind: input, shape index: {}]
  %s7 = inlined_call_operand.vmem [shape: bf16[2,64,32], index: 7, kind: input, shape index: {}]
  %s8 = inlined_call_operand.vmem [shape: bf16[32,34], index: 8, kind: input, shape index: {}]
  %s9 = inlined_call_operand.vmem [shape: f32[20,96], index: 9, kind: input, shape index: {}]
  %s10 = inlined_call_operand.hbm [shape: f32[2,2], index: 10, kind: output, shape index: {}]
  %s11 = sld [smem:[#allocation0]]
  $region50: #{bert_news_classifier.1} parent=0
    _
  %s13 = ssub.s32 1, %s11
  %s14 = scalar_select 0, %s13, %s11
  $region1: #{bert_news_classifier.1} parent=0
    #allocation2 [shape = 'u8[1024]{0}', space=vmem, size = 0x400, scoped, tag = 'output window, operand 0, single buffered']
    #allocation3 [shape = 's32[1]{0}', space=sflag, size = 0x4, scoped, tag = 'scoped memory for bert_news_classifier.1']
    %15 = vsyncpa [#allocation3], 0
    // Predicated region
    $region2: #{bert_news_classifier.1} parent=1 // pred_check
      _
    $region3: #{bert_news_classifier.1} parent=1 // pred_check_branch
      %17 = sbr.rel (0) target = $region5
    $region4: #{bert_news_classifier.1} parent=1 // pred_region
      _
    $region5: #{bert_news_classifier.1} parent=1 // pred_fallthru
      _
    // Predicated region
    $region6: #{bert_news_classifier.1} parent=1 // pred_check
      _
    $region7: #{bert_news_classifier.1} parent=1 // pred_check_branch
      %19 = sbr.rel (0) target = $region9
    $region8: #{bert_news_classifier.1} parent=1 // pred_region
      _
    $region9: #{bert_news_classifier.1} parent=1 // pred_fallthru
      _
    // Predicated region
    $region10: #{bert_news_classifier.1} parent=1 // pred_check
      _
    $region11: #{bert_news_classifier.1} parent=1 // pred_check_branch
      %21 = sbr.rel (0) target = $region13
    $region12: #{bert_news_classifier.1} parent=1 // pred_region
      _
    $region13: #{bert_news_classifier.1} parent=1 // pred_fallthru
      _
    // Predicated region
    $region14: #{bert_news_classifier.1} parent=1 // pred_check
      _
    $region15: #{bert_news_classifier.1} parent=1 // pred_check_branch
      %23 = sbr.rel (0) target = $region17
    $region16: #{bert_news_classifier.1} parent=1 // pred_region
      _
    $region17: #{bert_news_classifier.1} parent=1 // pred_fallthru
      _
    // Predicated region
    $region18: #{bert_news_classifier.1} parent=1 // pred_check
      _
    $region19: #{bert_news_classifier.1} parent=1 // pred_check_branch
      %25 = sbr.rel (0) target = $region21
    $region20: #{bert_news_classifier.1} parent=1 // pred_region
      _
    $region21: #{bert_news_classifier.1} parent=1 // pred_fallthru
      _
    // Predicated region
    $region22: #{bert_news_classifier.1} parent=1 // pred_check
      _
    $region23: #{bert_news_classifier.1} parent=1 // pred_check_branch
      %27 = sbr.rel (0) target = $region25
    $region24: #{bert_news_classifier.1} parent=1 // pred_region
      _
    $region25: #{bert_news_classifier.1} parent=1 // pred_fallthru
      _
    // Predicated region
    $region26: #{bert_news_classifier.1} parent=1 // pred_check
      _
    $region27: #{bert_news_classifier.1} parent=1 // pred_check_branch
      %29 = sbr.rel (0) target = $region29
    $region28: #{bert_news_classifier.1} parent=1 // pred_region
      _
    $region29: #{bert_news_classifier.1} parent=1 // pred_fallthru
      _
    // Predicated region
    $region30: #{bert_news_classifier.1} parent=1 // pred_check
      _
    $region31: #{bert_news_classifier.1} parent=1 // pred_check_branch
      %31 = sbr.rel (0) target = $region33
    $region32: #{bert_news_classifier.1} parent=1 // pred_region
      _
    $region33: #{bert_news_classifier.1} parent=1 // pred_fallthru
      _
    // Predicated region
    $region34: #{bert_news_classifier.1} parent=1 // pred_check
      _
    $region35: #{bert_news_classifier.1} parent=1 // pred_check_branch
      %33 = sbr.rel (0) target = $region37
    $region36: #{bert_news_classifier.1} parent=1 // pred_region
      _
    $region37: #{bert_news_classifier.1} parent=1 // pred_fallthru
      _
    // Predicated region
    $region38: #{bert_news_classifier.1} parent=1 // pred_check
      _
    $region39: #{bert_news_classifier.1} parent=1 // pred_check_branch
      %35 = sbr.rel (0) target = $region41
    $region40: #{bert_news_classifier.1} parent=1 // pred_region
      _
    $region41: #{bert_news_classifier.1} parent=1 // pred_fallthru
      _
    %v37 = vld [vmem:[%s0] sm:$0xff]
    %v38 = vld [vmem:[%s0 + $0x8] sm:$0xff]
    %v39 = vlaneseq
    %v40 = vand.u32 %v39, 127
    %41 = vset.pattern.permute.xlu0 0
    %42 = vperm.xlu0 %41, %v37
    %v43 = vpop.permute.xlu0 %42
    %44 = vset.pattern.permute.xlu0 0
    %45 = vperm.xlu0 %44, %v38
    %v46 = vpop.permute.xlu0 %45
    %vm47 = vcmp.eq.s32.totalorder %v40, %v43
    %vm48 = vcmp.eq.s32.totalorder %v40, %v46
    %v49 = vsel %vm47, 1, 0
    %v50 = vsel %vm48, 1, 0
    %v51 = vcvt.s32.f32 %v49
    %v52 = vcvt.s32.f32 %v50
    %v53 = vld [vmem:[%s2] sm:$0xff]
    %v54 = vld [vmem:[%s2 + $0x8] sm:$0xff]
    %v55 = vld [vmem:[%s2 + $0x10] sm:$0xff]
    %v56 = vld [vmem:[%s2 + $0x18] sm:$0xff]
    %v57 = vld [vmem:[%s2 + $0x20] sm:$0xff]
    %v58 = vld [vmem:[%s2 + $0x28] sm:$0xff]
    %v59 = vld [vmem:[%s2 + $0x30] sm:$0xff]
    %v60 = vld [vmem:[%s2 + $0x38] sm:$0xff]
    %v61 = vld [vmem:[%s2 + $0x40] sm:$0xff]
    %v62 = vld [vmem:[%s2 + $0x48] sm:$0xff]
    %v63 = vld [vmem:[%s2 + $0x50] sm:$0xff]
    %v64 = vld [vmem:[%s2 + $0x58] sm:$0xff]
    %v65 = vld [vmem:[%s2 + $0x60] sm:$0xf]
    %v66 = vld [vmem:[%s3] sm:$0xff]
    %v67 = vld [vmem:[%s3 + $0x8] sm:$0xff]
    %vm68 = vcmask 818176
    %v70 = vsel %vm68, %v51, 0
    %v73 = vsel %vm68, %v52, 0
    %vm75 = vcmask 1043456
    %v77 = vsel %vm75, %v65, 0
    %79 = vmatpush.msra.mxu0 0.0
    %80 = vmatpush.msra.mxu0 0.0
    %81 = vmatpush.msra.mxu0 0.0
    %82 = vmatpush.msra.mxu0 %v77
    %83 = vmatpush.msra.mxu0 %v64
    %84 = vmatpush.msra.mxu0 %v63
    %85 = vmatpush.msra.mxu0 %v62
    %86 = vmatpush.msra.mxu0 %v61
    %87 = vmatpush.msra.mxu0 %v60
    %88 = vmatpush.msra.mxu0 %v59
    %89 = vmatpush.msra.mxu0 %v58
    %90 = vmatpush.msra.mxu0 %v57
    %91 = vmatpush.msra.mxu0 %v56
    %92 = vmatpush.msra.mxu0 %v55
    %93 = vmatpush.msra.mxu0 %v54
    %94 = vmatpush.msra.mxu0 %v53
    %95 = vmatmul.f32.gmra.mxu0 %v70
    %v96 = vpop.f32.mrf.mxu0
    %v97 = vadd.f32 %v66, %v96
    %98 = vmatmul.f32.gmra.mxu0 %v73
    %v99 = vpop.f32.mrf.mxu0
    %v100 = vadd.f32 %v67, %v99
    %101 = vdwg.mxu0
    %v102 = vld [vmem:[%s9] sm:$0x1]
    %v103 = vld [vmem:[%s9 + $0x1] sm:$0x1]
    %vm104 = vcmask 261120
    %v105 = vsel %vm104, %v97, 0.0
    %106 = vadd.xlane.f32.xlu0 %v105
    %v107 = vpop.xlane.xlu0 %106
    %v108 = vsel %vm104, %v100, 0.0
    %109 = vadd.xlane.f32.xlu0 %v108
    %v110 = vpop.xlane.xlu0 %109
    %v111 = vrcp.pop 32.0
    %v112 = vmul.f32 32.0, %v111
    %v113 = vsub.f32 1.0, %v112
    %v114 = vmul.f32 %v111, %v113
    %v115 = vadd.f32 %v111, %v114
    %vm116 = vweird.f32 %v111
    %v117 = vsel %vm116, %v111, %v115
    %v118 = vmul.f32 %v107, %v117
    %v119 = vmul.f32 %v110, %v117
    %v120 = vsub.f32 %v97, %v118
    %v121 = vsub.f32 %v100, %v119
    %v122 = vmul.f32 %v120, %v120
    %v123 = vmul.f32 %v121, %v121
    %v124 = vsel %vm104, %v122, 0.0
    %125 = vadd.xlane.f32.xlu0 %v124
    %v126 = vpop.xlane.xlu0 %125
    %v127 = vsel %vm104, %v123, 0.0
    %128 = vadd.xlane.f32.xlu0 %v127
    %v129 = vpop.xlane.xlu0 %128
    %v130 = vmul.f32 %v126, %v117
    %v131 = vmul.f32 %v129, %v117
    %v132 = vadd.f32 %v130, 1e-12
    %v133 = vadd.f32 %v131, 1e-12
    %v134 = vrsqrt.pop %v132
    %v135 = vmul.f32 %v134, %v132
    %v136 = vmul.f32 %v135, %v134
    %v137 = vmul.f32 0.5, %v136
    %v138 = vsub.f32 1.5, %v137
    %v139 = vmul.f32 %v134, %v138
    %vm140 = vweird.f32 %v132
    %vm141 = vweird.f32 %v134
    %vm142 = vmor %vm140, %vm141
    %v143 = vsel %vm142, %v134, %v139
    %v144 = vrsqrt.pop %v133
    %v145 = vmul.f32 %v144, %v133
    %v146 = vmul.f32 %v145, %v144
    %v147 = vmul.f32 0.5, %v146
    %v148 = vsub.f32 1.5, %v147
    %v149 = vmul.f32 %v144, %v148
    %vm150 = vweird.f32 %v133
    %vm151 = vweird.f32 %v144
    %vm152 = vmor %vm150, %vm151
    %v153 = vsel %vm152, %v144, %v149
    %v154 = vmul.f32 %v120, %v143
    %v155 = vmul.f32 %v121, %v153
    %v156 = vperm.slane %v102, 0
    %v157 = vmul.f32 %v154, %v156
    %v158 = vmul.f32 %v155, %v156
    %v159 = vperm.slane %v103, 0
    %v160 = vadd.f32 %v157, %v159
    %v161 = vadd.f32 %v158, %v159
    %v162 = vld [vmem:[%s1] sm:$0xff]
    %v163 = vld [vmem:[%s1 + $0x8] sm:$0xff]
    %v164 = vld [vmem:[%s4] sm:$0xf]
    %v165 = vld [vmem:[%s4 + $0x4] sm:$0xf]
    %v166 = vld [vmem:[%s4 + $0x8] sm:$0xf]
    %v167 = vld [vmem:[%s4 + $0xc] sm:$0xf]
    %v168 = vld [vmem:[%s9 + $0x2] sm:$0x1]
    %v169 = vpack.c.bf16 %v161, %v160
    %v170 = vperm.slane %v168, 0
    %v175 = vunpack.c.l.b16 %v164
    %v176 = vunpack.c.l.b16 %v165
    %v177 = vunpack.c.l.b16 %v166
    %v178 = vunpack.c.l.b16 %v167
    %v179 = vpack.c.b16 %v176, %v175
    %v180 = vpack.c.b16 %v178, %v177
    %v184 = vsel %vm104, %v169, 0
    %186 = vmatpush.bf16.msra.mxu0 0
    %187 = vmatpush.bf16.msra.mxu0 0
    %188 = vmatpush.bf16.msra.mxu0 0
    %189 = vmatpush.bf16.msra.mxu0 0
    %190 = vmatpush.bf16.msra.mxu0 0
    %191 = vmatpush.bf16.msra.mxu0 0
    %192 = vmatpush.bf16.msra.mxu0 %v180
    %193 = vmatpush.bf16.msra.mxu0 %v179
    %194 = vmatmul.bf16.gmra.mxu0 %v184
    %v195 = vpop.f32.mrf.mxu0
    %v196 = vadd.f32 %v170, %v195
    %v197 = vpop.f32.mrf.mxu0
    %v198 = vadd.f32 %v170, %v197
    %199 = vdwg.mxu0
    %v200 = vpack.c.bf16 %v198, %v196
    %202 = vrot.lane.b32.xlu0 %v200, 96
    %v203 = vpop.permute.xlu0 %202
    %vm204 = vcmask 64512
    %v206 = vsel %vm204, %v200, 0
    %v209 = vsel %vm204, %v203, 0
    %211 = vmatpush.bf16.xpose.msra.mxu0 0
    %212 = vmatpush.bf16.xpose.msra.mxu0 0
    %213 = vmatpush.bf16.xpose.msra.mxu0 0
    %214 = vmatpush.bf16.xpose.msra.mxu0 0
    %215 = vmatpush.bf16.xpose.msra.mxu0 0
    %216 = vmatpush.bf16.xpose.msra.mxu0 0
    %217 = vmatpush.bf16.xpose.msra.mxu0 0
    %218 = vmatpush.bf16.xpose.msra.mxu0 %v209
    %219 = vmatmul.bf16.gmra.mxu0 %v206
    %v220 = vpop.f32.mrf.mxu0
    %v221 = vadd.f32 %v162, %v220
    %v222 = vpop.f32.mrf.mxu0
    %v223 = vadd.f32 %v163, %v222
    %224 = vdwg.mxu0
    %vm225 = vcmask 130048
    %v226 = vsel %vm225, %v221, -inf
    %227 = vmax.xlane.f32.xlu0 %v226
    %v228 = vpop.xlane.xlu0 %227
    %v229 = vsel %vm225, %v223, -inf
    %230 = vmax.xlane.f32.xlu0 %v229
    %v231 = vpop.xlane.xlu0 %230
    %v232 = vsub.f32 %v221, %v228
    %v233 = vsub.f32 %v223, %v231
    %v234 = vmul.f32 %v232, 1.442695
    %v235 = vpow.pop %v234
    %v236 = vmul.f32 %v233, 1.442695
    %v237 = vpow.pop %v236
    %v238 = vsel %vm225, %v235, 0.0
    %239 = vadd.xlane.f32.xlu0 %v238
    %v240 = vpop.xlane.xlu0 %239
    %v241 = vsel %vm225, %v237, 0.0
    %242 = vadd.xlane.f32.xlu0 %v241
    %v243 = vpop.xlane.xlu0 %242
    %v244 = vrcp.pop %v240
    %v245 = vmul.f32 %v240, %v244
    %v246 = vsub.f32 1.0, %v245
    %v247 = vmul.f32 %v244, %v246
    %v248 = vadd.f32 %v244, %v247
    %vm249 = vweird.f32 %v240
    %vm250 = vweird.f32 %v244
    %vm251 = vmor %vm249, %vm250
    %v252 = vsel %vm251, %v244, %v248
    %v253 = vand.u32 2147483647, %v240
    %vm254 = vcmp.eq.f32.partialorder %v253, 8.507059e+37
    %v255 = vand.u32 %v240, 2147483648
    %v256 = vor.u32 1.1754944e-38, %v255
    %v257 = vsel %vm254, %v256, %v252
    %v258 = vmul.f32 %v235, %v257
    %v259 = vrcp.pop %v243
    %v260 = vmul.f32 %v243, %v259
    %v261 = vsub.f32 1.0, %v260
    %v262 = vmul.f32 %v259, %v261
    %v263 = vadd.f32 %v259, %v262
    %vm264 = vweird.f32 %v243
    %vm265 = vweird.f32 %v259
    %vm266 = vmor %vm264, %vm265
    %v267 = vsel %vm266, %v259, %v263
    %v268 = vand.u32 2147483647, %v243
    %vm269 = vcmp.eq.f32.partialorder %v268, 8.507059e+37
    %v270 = vand.u32 %v243, 2147483648
    %v271 = vor.u32 1.1754944e-38, %v270
    %v272 = vsel %vm269, %v271, %v267
    %v273 = vmul.f32 %v237, %v272
    %v274 = vpack.c.bf16 %v273, %v258
    %275 = vrot.lane.b32.xlu0 %v200, 64
    %v276 = vpop.permute.xlu0 %275
    %v279 = vsel %vm225, %v274, 0
    %281 = vmatpush.bf16.msra.mxu0 0
    %282 = vmatpush.bf16.msra.mxu0 0
    %283 = vmatpush.bf16.msra.mxu0 0
    %284 = vmatpush.bf16.msra.mxu0 0
    %285 = vmatpush.bf16.msra.mxu0 0
    %286 = vmatpush.bf16.msra.mxu0 0
    %287 = vmatpush.bf16.msra.mxu0 0
    %288 = vmatpush.bf16.msra.mxu0 %v276
    %289 = vmatmul.bf16.gmra.mxu0 %v279
    %v290 = vpop.f32.mrf.mxu0
    %v291 = vadd.f32 0.0, %v290
    %v292 = vpop.f32.mrf.mxu0
    %v293 = vadd.f32 0.0, %v292
    %294 = vdwg.mxu0
    %v295 = vpack.c.bf16 %v293, %v291
    %v296 = vld [vmem:[%s5] sm:$0xf]
    %297 = vrot.lane.b32.xlu0 %v200, 120
    %v298 = vpop.permute.xlu0 %297
    %299 = vrot.lane.b32.xlu0 %v200, 88
    %v300 = vpop.permute.xlu0 %299
    %v302 = vsel %vm204, %v298, 0
    %v305 = vsel %vm204, %v300, 0
    %307 = vmatpush.bf16.xpose.msra.mxu0 0
    %308 = vmatpush.bf16.xpose.msra.mxu0 0
    %309 = vmatpush.bf16.xpose.msra.mxu0 0
    %310 = vmatpush.bf16.xpose.msra.mxu0 0
    %311 = vmatpush.bf16.xpose.msra.mxu0 0
    %312 = vmatpush.bf16.xpose.msra.mxu0 0
    %313 = vmatpush.bf16.xpose.msra.mxu0 0
    %314 = vmatpush.bf16.xpose.msra.mxu0 %v305
    %315 = vmatmul.bf16.gmra.mxu0 %v302
    %v316 = vpop.f32.mrf.mxu0
    %v317 = vadd.f32 %v162, %v316
    %v318 = vpop.f32.mrf.mxu0
    %v319 = vadd.f32 %v163, %v318
    %320 = vdwg.mxu0
    %v321 = vsel %vm225, %v317, -inf
    %322 = vmax.xlane.f32.xlu0 %v321
    %v323 = vpop.xlane.xlu0 %322
    %v324 = vsel %vm225, %v319, -inf
    %325 = vmax.xlane.f32.xlu0 %v324
    %v326 = vpop.xlane.xlu0 %325
    %v327 = vsub.f32 %v317, %v323
    %v328 = vsub.f32 %v319, %v326
    %v329 = vmul.f32 %v327, 1.442695
    %v330 = vpow.pop %v329
    %v331 = vmul.f32 %v328, 1.442695
    %v332 = vpow.pop %v331
    %v333 = vsel %vm225, %v330, 0.0
    %334 = vadd.xlane.f32.xlu0 %v333
    %v335 = vpop.xlane.xlu0 %334
    %v336 = vsel %vm225, %v332, 0.0
    %337 = vadd.xlane.f32.xlu0 %v336
    %v338 = vpop.xlane.xlu0 %337
    %v339 = vrcp.pop %v335
    %v340 = vmul.f32 %v335, %v339
    %v341 = vsub.f32 1.0, %v340
    %v342 = vmul.f32 %v339, %v341
    %v343 = vadd.f32 %v339, %v342
    %vm344 = vweird.f32 %v335
    %vm345 = vweird.f32 %v339
    %vm346 = vmor %vm344, %vm345
    %v347 = vsel %vm346, %v339, %v343
    %v348 = vand.u32 2147483647, %v335
    %vm349 = vcmp.eq.f32.partialorder %v348, 8.507059e+37
    %v350 = vand.u32 %v335, 2147483648
    %v351 = vor.u32 1.1754944e-38, %v350
    %v352 = vsel %vm349, %v351, %v347
    %v353 = vmul.f32 %v330, %v352
    %v354 = vrcp.pop %v338
    %v355 = vmul.f32 %v338, %v354
    %v356 = vsub.f32 1.0, %v355
    %v357 = vmul.f32 %v354, %v356
    %v358 = vadd.f32 %v354, %v357
    %vm359 = vweird.f32 %v338
    %vm360 = vweird.f32 %v354
    %vm361 = vmor %vm359, %vm360
    %v362 = vsel %vm361, %v354, %v358
    %v363 = vand.u32 2147483647, %v338
    %vm364 = vcmp.eq.f32.partialorder %v363, 8.507059e+37
    %v365 = vand.u32 %v338, 2147483648
    %v366 = vor.u32 1.1754944e-38, %v365
    %v367 = vsel %vm364, %v366, %v362
    %v368 = vmul.f32 %v332, %v367
    %v369 = vpack.c.bf16 %v368, %v353
    %370 = vrot.lane.b32.xlu0 %v200, 56
    %v371 = vpop.permute.xlu0 %370
    %v374 = vsel %vm225, %v369, 0
    %376 = vmatpush.bf16.msra.mxu0 0
    %377 = vmatpush.bf16.msra.mxu0 0
    %378 = vmatpush.bf16.msra.mxu0 0
    %379 = vmatpush.bf16.msra.mxu0 0
    %380 = vmatpush.bf16.msra.mxu0 0
    %381 = vmatpush.bf16.msra.mxu0 0
    %382 = vmatpush.bf16.msra.mxu0 0
    %383 = vmatpush.bf16.msra.mxu0 %v371
    %384 = vmatmul.bf16.gmra.mxu0 %v374
    %v385 = vpop.f32.mrf.mxu0
    %v386 = vadd.f32 0.0, %v385
    %v387 = vpop.f32.mrf.mxu0
    %v388 = vadd.f32 0.0, %v387
    %389 = vdwg.mxu0
    %v390 = vpack.c.bf16 %v388, %v386
    %s391 = scalar_lea.vmem %s5, 4
    %v392 = vld [vmem:[%s391] sm:$0xf]
    %v394 = vsel %vm204, %v390, 0
    %v397 = vsel %vm75, %v392, 0
    %399 = vmatpush.bf16.msra.mxu0 0
    %400 = vmatpush.bf16.msra.mxu0 0
    %401 = vmatpush.bf16.msra.mxu0 0
    %402 = vmatpush.bf16.msra.mxu0 0
    %403 = vmatpush.bf16.msra.mxu0 0
    %404 = vmatpush.bf16.msra.mxu0 0
    %405 = vmatpush.bf16.msra.mxu0 0
    %406 = vmatpush.bf16.msra.mxu0 %v397
    %407 = vmatmul.bf16.gmra.mxu0 %v394
    %v408 = vpop.f32.mrf.mxu0
    %v409 = vadd.f32 0.0, %v408
    %v410 = vpop.f32.mrf.mxu0
    %v411 = vadd.f32 0.0, %v410
    %412 = vdwg.mxu0
    %v414 = vsel %vm204, %v295, 0
    %v417 = vsel %vm75, %v296, 0
    %419 = vmatpush.bf16.msra.mxu0 0
    %420 = vmatpush.bf16.msra.mxu0 0
    %421 = vmatpush.bf16.msra.mxu0 0
    %422 = vmatpush.bf16.msra.mxu0 0
    %423 = vmatpush.bf16.msra.mxu0 0
    %424 = vmatpush.bf16.msra.mxu0 0
    %425 = vmatpush.bf16.msra.mxu0 0
    %426 = vmatpush.bf16.msra.mxu0 %v417
    %427 = vmatmul.bf16.gmra.mxu0 %v414
    %v428 = vpop.f32.mrf.mxu0
    %v429 = vadd.f32 %v409, %v428
    %v430 = vpop.f32.mrf.mxu0
    %v431 = vadd.f32 %v411, %v430
    %432 = vdwg.mxu0
    %433 = vrot.lane.b32.xlu0 %v200, 112
    %v434 = vpop.permute.xlu0 %433
    %435 = vrot.lane.b32.xlu0 %v200, 80
    %v436 = vpop.permute.xlu0 %435
    %v438 = vsel %vm204, %v434, 0
    %v441 = vsel %vm204, %v436, 0
    %443 = vmatpush.bf16.xpose.msra.mxu0 0
    %444 = vmatpush.bf16.xpose.msra.mxu0 0
    %445 = vmatpush.bf16.xpose.msra.mxu0 0
    %446 = vmatpush.bf16.xpose.msra.mxu0 0
    %447 = vmatpush.bf16.xpose.msra.mxu0 0
    %448 = vmatpush.bf16.xpose.msra.mxu0 0
    %449 = vmatpush.bf16.xpose.msra.mxu0 0
    %450 = vmatpush.bf16.xpose.msra.mxu0 %v441
    %451 = vmatmul.bf16.gmra.mxu0 %v438
    %v452 = vpop.f32.mrf.mxu0
    %v453 = vadd.f32 %v162, %v452
    %v454 = vpop.f32.mrf.mxu0
    %v455 = vadd.f32 %v163, %v454
    %456 = vdwg.mxu0
    %v457 = vsel %vm225, %v453, -inf
    %458 = vmax.xlane.f32.xlu0 %v457
    %v459 = vpop.xlane.xlu0 %458
    %v460 = vsel %vm225, %v455, -inf
    %461 = vmax.xlane.f32.xlu0 %v460
    %v462 = vpop.xlane.xlu0 %461
    %v463 = vsub.f32 %v453, %v459
    %v464 = vsub.f32 %v455, %v462
    %v465 = vmul.f32 %v463, 1.442695
    %v466 = vpow.pop %v465
    %v467 = vmul.f32 %v464, 1.442695
    %v468 = vpow.pop %v467
    %v469 = vsel %vm225, %v466, 0.0
    %470 = vadd.xlane.f32.xlu0 %v469
    %v471 = vpop.xlane.xlu0 %470
    %v472 = vsel %vm225, %v468, 0.0
    %473 = vadd.xlane.f32.xlu0 %v472
    %v474 = vpop.xlane.xlu0 %473
    %v475 = vrcp.pop %v471
    %v476 = vmul.f32 %v471, %v475
    %v477 = vsub.f32 1.0, %v476
    %v478 = vmul.f32 %v475, %v477
    %v479 = vadd.f32 %v475, %v478
    %vm480 = vweird.f32 %v471
    %vm481 = vweird.f32 %v475
    %vm482 = vmor %vm480, %vm481
    %v483 = vsel %vm482, %v475, %v479
    %v484 = vand.u32 2147483647, %v471
    %vm485 = vcmp.eq.f32.partialorder %v484, 8.507059e+37
    %v486 = vand.u32 %v471, 2147483648
    %v487 = vor.u32 1.1754944e-38, %v486
    %v488 = vsel %vm485, %v487, %v483
    %v489 = vmul.f32 %v466, %v488
    %v490 = vrcp.pop %v474
    %v491 = vmul.f32 %v474, %v490
    %v492 = vsub.f32 1.0, %v491
    %v493 = vmul.f32 %v490, %v492
    %v494 = vadd.f32 %v490, %v493
    %vm495 = vweird.f32 %v474
    %vm496 = vweird.f32 %v490
    %vm497 = vmor %vm495, %vm496
    %v498 = vsel %vm497, %v490, %v494
    %v499 = vand.u32 2147483647, %v474
    %vm500 = vcmp.eq.f32.partialorder %v499, 8.507059e+37
    %v501 = vand.u32 %v474, 2147483648
    %v502 = vor.u32 1.1754944e-38, %v501
    %v503 = vsel %vm500, %v502, %v498
    %v504 = vmul.f32 %v468, %v503
    %v505 = vpack.c.bf16 %v504, %v489
    %506 = vrot.lane.b32.xlu0 %v200, 48
    %v507 = vpop.permute.xlu0 %506
    %v510 = vsel %vm225, %v505, 0
    %512 = vmatpush.bf16.msra.mxu0 0
    %513 = vmatpush.bf16.msra.mxu0 0
    %514 = vmatpush.bf16.msra.mxu0 0
    %515 = vmatpush.bf16.msra.mxu0 0
    %516 = vmatpush.bf16.msra.mxu0 0
    %517 = vmatpush.bf16.msra.mxu0 0
    %518 = vmatpush.bf16.msra.mxu0 0
    %519 = vmatpush.bf16.msra.mxu0 %v507
    %520 = vmatmul.bf16.gmra.mxu0 %v510
    %v521 = vpop.f32.mrf.mxu0
    %v522 = vadd.f32 0.0, %v521
    %v523 = vpop.f32.mrf.mxu0
    %v524 = vadd.f32 0.0, %v523
    %525 = vdwg.mxu0
    %v526 = vpack.c.bf16 %v524, %v522
    %s527 = scalar_lea.vmem %s5, 8
    %v528 = vld [vmem:[%s527] sm:$0xf]
    %v530 = vsel %vm204, %v526, 0
    %v533 = vsel %vm75, %v528, 0
    %535 = vmatpush.bf16.msra.mxu0 0
    %536 = vmatpush.bf16.msra.mxu0 0
    %537 = vmatpush.bf16.msra.mxu0 0
    %538 = vmatpush.bf16.msra.mxu0 0
    %539 = vmatpush.bf16.msra.mxu0 0
    %540 = vmatpush.bf16.msra.mxu0 0
    %541 = vmatpush.bf16.msra.mxu0 0
    %542 = vmatpush.bf16.msra.mxu0 %v533
    %543 = vmatmul.bf16.gmra.mxu0 %v530
    %v544 = vpop.f32.mrf.mxu0
    %v545 = vadd.f32 0.0, %v544
    %v546 = vpop.f32.mrf.mxu0
    %v547 = vadd.f32 0.0, %v546
    %548 = vdwg.mxu0
    %v549 = vadd.f32 %v429, %v545
    %v550 = vadd.f32 %v431, %v547
    %551 = vrot.lane.b32.xlu0 %v200, 104
    %v552 = vpop.permute.xlu0 %551
    %553 = vrot.lane.b32.xlu0 %v200, 72
    %v554 = vpop.permute.xlu0 %553
    %v556 = vsel %vm204, %v552, 0
    %v559 = vsel %vm204, %v554, 0
    %561 = vmatpush.bf16.xpose.msra.mxu0 0
    %562 = vmatpush.bf16.xpose.msra.mxu0 0
    %563 = vmatpush.bf16.xpose.msra.mxu0 0
    %564 = vmatpush.bf16.xpose.msra.mxu0 0
    %565 = vmatpush.bf16.xpose.msra.mxu0 0
    %566 = vmatpush.bf16.xpose.msra.mxu0 0
    %567 = vmatpush.bf16.xpose.msra.mxu0 0
    %568 = vmatpush.bf16.xpose.msra.mxu0 %v559
    %569 = vmatmul.bf16.gmra.mxu0 %v556
    %v570 = vpop.f32.mrf.mxu0
    %v571 = vadd.f32 %v162, %v570
    %v572 = vpop.f32.mrf.mxu0
    %v573 = vadd.f32 %v163, %v572
    %574 = vdwg.mxu0
    %v575 = vsel %vm225, %v571, -inf
    %576 = vmax.xlane.f32.xlu0 %v575
    %v577 = vpop.xlane.xlu0 %576
    %v578 = vsel %vm225, %v573, -inf
    %579 = vmax.xlane.f32.xlu0 %v578
    %v580 = vpop.xlane.xlu0 %579
    %v581 = vsub.f32 %v571, %v577
    %v582 = vsub.f32 %v573, %v580
    %v583 = vmul.f32 %v581, 1.442695
    %v584 = vpow.pop %v583
    %v585 = vmul.f32 %v582, 1.442695
    %v586 = vpow.pop %v585
    %v587 = vsel %vm225, %v584, 0.0
    %588 = vadd.xlane.f32.xlu0 %v587
    %v589 = vpop.xlane.xlu0 %588
    %v590 = vsel %vm225, %v586, 0.0
    %591 = vadd.xlane.f32.xlu0 %v590
    %v592 = vpop.xlane.xlu0 %591
    %v593 = vrcp.pop %v589
    %v594 = vmul.f32 %v589, %v593
    %v595 = vsub.f32 1.0, %v594
    %v596 = vmul.f32 %v593, %v595
    %v597 = vadd.f32 %v593, %v596
    %vm598 = vweird.f32 %v589
    %vm599 = vweird.f32 %v593
    %vm600 = vmor %vm598, %vm599
    %v601 = vsel %vm600, %v593, %v597
    %v602 = vand.u32 2147483647, %v589
    %vm603 = vcmp.eq.f32.partialorder %v602, 8.507059e+37
    %v604 = vand.u32 %v589, 2147483648
    %v605 = vor.u32 1.1754944e-38, %v604
    %v606 = vsel %vm603, %v605, %v601
    %v607 = vmul.f32 %v584, %v606
    %v608 = vrcp.pop %v592
    %v609 = vmul.f32 %v592, %v608
    %v610 = vsub.f32 1.0, %v609
    %v611 = vmul.f32 %v608, %v610
    %v612 = vadd.f32 %v608, %v611
    %vm613 = vweird.f32 %v592
    %vm614 = vweird.f32 %v608
    %vm615 = vmor %vm613, %vm614
    %v616 = vsel %vm615, %v608, %v612
    %v617 = vand.u32 2147483647, %v592
    %vm618 = vcmp.eq.f32.partialorder %v617, 8.507059e+37
    %v619 = vand.u32 %v592, 2147483648
    %v620 = vor.u32 1.1754944e-38, %v619
    %v621 = vsel %vm618, %v620, %v616
    %v622 = vmul.f32 %v586, %v621
    %v623 = vpack.c.bf16 %v622, %v607
    %624 = vrot.lane.b32.xlu0 %v200, 40
    %v625 = vpop.permute.xlu0 %624
    %v628 = vsel %vm225, %v623, 0
    %630 = vmatpush.bf16.msra.mxu0 0
    %631 = vmatpush.bf16.msra.mxu0 0
    %632 = vmatpush.bf16.msra.mxu0 0
    %633 = vmatpush.bf16.msra.mxu0 0
    %634 = vmatpush.bf16.msra.mxu0 0
    %635 = vmatpush.bf16.msra.mxu0 0
    %636 = vmatpush.bf16.msra.mxu0 0
    %637 = vmatpush.bf16.msra.mxu0 %v625
    %638 = vmatmul.bf16.gmra.mxu0 %v628
    %v639 = vpop.f32.mrf.mxu0
    %v640 = vadd.f32 0.0, %v639
    %v641 = vpop.f32.mrf.mxu0
    %v642 = vadd.f32 0.0, %v641
    %643 = vdwg.mxu0
    %v644 = vpack.c.bf16 %v642, %v640
    %s645 = scalar_lea.vmem %s5, 12
    %v646 = vld [vmem:[%s645] sm:$0xf]
    %v648 = vsel %vm204, %v644, 0
    %v651 = vsel %vm75, %v646, 0
    %653 = vmatpush.bf16.msra.mxu0 0
    %654 = vmatpush.bf16.msra.mxu0 0
    %655 = vmatpush.bf16.msra.mxu0 0
    %656 = vmatpush.bf16.msra.mxu0 0
    %657 = vmatpush.bf16.msra.mxu0 0
    %658 = vmatpush.bf16.msra.mxu0 0
    %659 = vmatpush.bf16.msra.mxu0 0
    %660 = vmatpush.bf16.msra.mxu0 %v651
    %661 = vmatmul.bf16.gmra.mxu0 %v648
    %v662 = vpop.f32.mrf.mxu0
    %v663 = vadd.f32 0.0, %v662
    %v664 = vpop.f32.mrf.mxu0
    %v665 = vadd.f32 0.0, %v664
    %666 = vdwg.mxu0
    %v667 = vadd.f32 %v549, %v663
    %v668 = vadd.f32 %v550, %v665
    %v669 = vld [vmem:[%s9 + $0x3] sm:$0x1]
    %v670 = vperm.slane %v669, 0
    %v671 = vadd.f32 %v667, %v670
    %v672 = vadd.f32 %v668, %v670
    %v673 = vadd.f32 %v671, %v160
    %v674 = vadd.f32 %v672, %v161
    %v675 = vld [vmem:[%s9 + $0x4] sm:$0x1]
    %v676 = vld [vmem:[%s9 + $0x5] sm:$0x1]
    %v677 = vsel %vm104, %v673, 0.0
    %678 = vadd.xlane.f32.xlu0 %v677
    %v679 = vpop.xlane.xlu0 %678
    %v680 = vsel %vm104, %v674, 0.0
    %681 = vadd.xlane.f32.xlu0 %v680
    %v682 = vpop.xlane.xlu0 %681
    %v683 = vmul.f32 %v679, %v117
    %v684 = vmul.f32 %v682, %v117
    %v685 = vsub.f32 %v673, %v683
    %v686 = vsub.f32 %v674, %v684
    %v687 = vmul.f32 %v685, %v685
    %v688 = vmul.f32 %v686, %v686
    %v689 = vsel %vm104, %v687, 0.0
    %690 = vadd.xlane.f32.xlu0 %v689
    %v691 = vpop.xlane.xlu0 %690
    %v692 = vsel %vm104, %v688, 0.0
    %693 = vadd.xlane.f32.xlu0 %v692
    %v694 = vpop.xlane.xlu0 %693
    %v695 = vmul.f32 %v691, %v117
    %v696 = vmul.f32 %v694, %v117
    %v697 = vadd.f32 %v695, 1e-12
    %v698 = vadd.f32 %v696, 1e-12
    %v699 = vrsqrt.pop %v697
    %v700 = vmul.f32 %v699, %v697
    %v701 = vmul.f32 %v700, %v699
    %v702 = vmul.f32 0.5, %v701
    %v703 = vsub.f32 1.5, %v702
    %v704 = vmul.f32 %v699, %v703
    %vm705 = vweird.f32 %v697
    %vm706 = vweird.f32 %v699
    %vm707 = vmor %vm705, %vm706
    %v708 = vsel %vm707, %v699, %v704
    %v709 = vrsqrt.pop %v698
    %v710 = vmul.f32 %v709, %v698
    %v711 = vmul.f32 %v710, %v709
    %v712 = vmul.f32 0.5, %v711
    %v713 = vsub.f32 1.5, %v712
    %v714 = vmul.f32 %v709, %v713
    %vm715 = vweird.f32 %v698
    %vm716 = vweird.f32 %v709
    %vm717 = vmor %vm715, %vm716
    %v718 = vsel %vm717, %v709, %v714
    %v719 = vmul.f32 %v685, %v708
    %v720 = vmul.f32 %v686, %v718
    %v721 = vperm.slane %v675, 0
    %v722 = vmul.f32 %v719, %v721
    %v723 = vmul.f32 %v720, %v721
    %v724 = vperm.slane %v676, 0
    %v725 = vadd.f32 %v722, %v724
    %v726 = vadd.f32 %v723, %v724
    %v727 = vld [vmem:[%s6] sm:$0xf]
    %v728 = vld [vmem:[%s6 + $0x4] sm:$0xf]
    %v729 = vld [vmem:[%s6 + $0x8] sm:$0xf]
    %v730 = vld [vmem:[%s6 + $0xc] sm:$0xf]
    %v731 = vld [vmem:[%s9 + $0x6] sm:$0x1]
    %v732 = vpack.c.bf16 %v726, %v725
    %v733 = vperm.slane %v731, 0
    %v738 = vunpack.c.l.b16 %v727
    %v739 = vunpack.c.l.b16 %v728
    %v740 = vunpack.c.l.b16 %v729
    %v741 = vunpack.c.l.b16 %v730
    %v742 = vpack.c.b16 %v739, %v738
    %v743 = vpack.c.b16 %v741, %v740
    %v747 = vsel %vm104, %v732, 0
    %749 = vmatpush.bf16.msra.mxu0 0
    %750 = vmatpush.bf16.msra.mxu0 0
    %751 = vmatpush.bf16.msra.mxu0 0
    %752 = vmatpush.bf16.msra.mxu0 0
    %753 = vmatpush.bf16.msra.mxu0 0
    %754 = vmatpush.bf16.msra.mxu0 0
    %755 = vmatpush.bf16.msra.mxu0 %v743
    %756 = vmatpush.bf16.msra.mxu0 %v742
    %757 = vmatmul.bf16.gmra.mxu0 %v747
    %v758 = vpop.f32.mrf.mxu0
    %v759 = vadd.f32 %v733, %v758
    %v760 = vpop.f32.mrf.mxu0
    %v761 = vadd.f32 %v733, %v760
    %762 = vdwg.mxu0
    %v763 = vmul.f32 %v759, 0.5
    %v764 = vmul.f32 %v761, 0.5
    %v765 = vmul.f32 %v759, 0.044715
    %v766 = vmul.f32 %v761, 0.044715
    %v767 = vmul.f32 %v765, %v759
    %v768 = vmul.f32 %v766, %v761
    %v769 = vmul.f32 %v767, %v759
    %v770 = vmul.f32 %v768, %v761
    %v771 = vadd.f32 %v759, %v769
    %v772 = vadd.f32 %v761, %v770
    %v773 = vmul.f32 %v771, 0.7978846
    %v774 = vmul.f32 %v772, 0.7978846
    %v775 = vtanh.pop %v773
    %v776 = vtanh.pop %v774
    %v777 = vadd.f32 %v775, 1.0
    %v778 = vadd.f32 %v776, 1.0
    %v779 = vmul.f32 %v763, %v777
    %v780 = vmul.f32 %v764, %v778
    %v781 = vld [vmem:[%s7] sm:$0xf]
    %v782 = vld [vmem:[%s7 + $0x4] sm:$0xf]
    %v783 = vld [vmem:[%s7 + $0x8] sm:$0xf]
    %v784 = vld [vmem:[%s7 + $0xc] sm:$0xf]
    %v785 = vld [vmem:[%s7 + $0x10] sm:$0xf]
    %v786 = vld [vmem:[%s7 + $0x14] sm:$0xf]
    %v787 = vld [vmem:[%s7 + $0x18] sm:$0xf]
    %v788 = vld [vmem:[%s7 + $0x1c] sm:$0xf]
    %v789 = vld [vmem:[%s9 + $0x7] sm:$0x1]
    %v790 = vpack.c.bf16 %v780, %v779
    %v791 = vperm.slane %v789, 0
    %v800 = vunpack.c.l.b16 %v781
    %v801 = vunpack.c.l.b16 %v782
    %v802 = vunpack.c.l.b16 %v783
    %v803 = vunpack.c.l.b16 %v784
    %v804 = vunpack.c.l.b16 %v785
    %v805 = vunpack.c.l.b16 %v786
    %v806 = vunpack.c.l.b16 %v787
    %v807 = vunpack.c.l.b16 %v788
    %v808 = vpack.c.b16 %v801, %v800
    %v809 = vpack.c.b16 %v803, %v802
    %v810 = vpack.c.b16 %v805, %v804
    %v811 = vpack.c.b16 %v807, %v806
    %vm816 = vcmask 523264
    %v818 = vsel %vm816, %v790, 0
    %820 = vmatpush.bf16.msra.mxu0 0
    %821 = vmatpush.bf16.msra.mxu0 0
    %822 = vmatpush.bf16.msra.mxu0 0
    %823 = vmatpush.bf16.msra.mxu0 0
    %824 = vmatpush.bf16.msra.mxu0 %v811
    %825 = vmatpush.bf16.msra.mxu0 %v810
    %826 = vmatpush.bf16.msra.mxu0 %v809
    %827 = vmatpush.bf16.msra.mxu0 %v808
    %828 = vmatmul.bf16.gmra.mxu0 %v818
    %v829 = vpop.f32.mrf.mxu0
    %v830 = vadd.f32 %v791, %v829
    %v831 = vpop.f32.mrf.mxu0
    %v832 = vadd.f32 %v791, %v831
    %833 = vdwg.mxu0
    %v834 = vadd.f32 %v830, %v725
    %v835 = vadd.f32 %v832, %v726
    %v836 = vld [vmem:[%s9 + $0x8] sm:$0x1]
    %v837 = vld [vmem:[%s9 + $0x9] sm:$0x1]
    %v838 = vsel %vm104, %v834, 0.0
    %839 = vadd.xlane.f32.xlu0 %v838
    %v840 = vpop.xlane.xlu0 %839
    %v841 = vsel %vm104, %v835, 0.0
    %842 = vadd.xlane.f32.xlu0 %v841
    %v843 = vpop.xlane.xlu0 %842
    %v844 = vmul.f32 %v840, %v117
    %v845 = vmul.f32 %v843, %v117
    %v846 = vsub.f32 %v834, %v844
    %v847 = vsub.f32 %v835, %v845
    %v848 = vmul.f32 %v846, %v846
    %v849 = vmul.f32 %v847, %v847
    %v850 = vsel %vm104, %v848, 0.0
    %851 = vadd.xlane.f32.xlu0 %v850
    %v852 = vpop.xlane.xlu0 %851
    %v853 = vsel %vm104, %v849, 0.0
    %854 = vadd.xlane.f32.xlu0 %v853
    %v855 = vpop.xlane.xlu0 %854
    %v856 = vmul.f32 %v852, %v117
    %v857 = vmul.f32 %v855, %v117
    %v858 = vadd.f32 %v856, 1e-12
    %v859 = vadd.f32 %v857, 1e-12
    %v860 = vrsqrt.pop %v858
    %v861 = vmul.f32 %v860, %v858
    %v862 = vmul.f32 %v861, %v860
    %v863 = vmul.f32 0.5, %v862
    %v864 = vsub.f32 1.5, %v863
    %v865 = vmul.f32 %v860, %v864
    %vm866 = vweird.f32 %v858
    %vm867 = vweird.f32 %v860
    %vm868 = vmor %vm866, %vm867
    %v869 = vsel %vm868, %v860, %v865
    %v870 = vrsqrt.pop %v859
    %v871 = vmul.f32 %v870, %v859
    %v872 = vmul.f32 %v871, %v870
    %v873 = vmul.f32 0.5, %v872
    %v874 = vsub.f32 1.5, %v873
    %v875 = vmul.f32 %v870, %v874
    %vm876 = vweird.f32 %v859
    %vm877 = vweird.f32 %v870
    %vm878 = vmor %vm876, %vm877
    %v879 = vsel %vm878, %v870, %v875
    %v880 = vmul.f32 %v846, %v869
    %v881 = vmul.f32 %v847, %v879
    %v882 = vperm.slane %v836, 0
    %v883 = vmul.f32 %v880, %v882
    %v884 = vmul.f32 %v881, %v882
    %v885 = vperm.slane %v837, 0
    %v886 = vadd.f32 %v883, %v885
    %v887 = vadd.f32 %v884, %v885
    %s888 = scalar_lea.vmem %s4, 16
    %v889 = vld [vmem:[%s888] sm:$0xf]
    %v890 = vld [vmem:[%s888 + $0x4] sm:$0xf]
    %v891 = vld [vmem:[%s888 + $0x8] sm:$0xf]
    %v892 = vld [vmem:[%s888 + $0xc] sm:$0xf]
    %v893 = vld [vmem:[%s9 + $0xa] sm:$0x1]
    %v894 = vpack.c.bf16 %v887, %v886
    %v895 = vperm.slane %v893, 0
    %v900 = vunpack.c.l.b16 %v889
    %v901 = vunpack.c.l.b16 %v890
    %v902 = vunpack.c.l.b16 %v891
    %v903 = vunpack.c.l.b16 %v892
    %v904 = vpack.c.b16 %v901, %v900
    %v905 = vpack.c.b16 %v903, %v902
    %v909 = vsel %vm104, %v894, 0
    %911 = vmatpush.bf16.msra.mxu0 0
    %912 = vmatpush.bf16.msra.mxu0 0
    %913 = vmatpush.bf16.msra.mxu0 0
    %914 = vmatpush.bf16.msra.mxu0 0
    %915 = vmatpush.bf16.msra.mxu0 0
    %916 = vmatpush.bf16.msra.mxu0 0
    %917 = vmatpush.bf16.msra.mxu0 %v905
    %918 = vmatpush.bf16.msra.mxu0 %v904
    %919 = vmatmul.bf16.gmra.mxu0 %v909
    %v920 = vpop.f32.mrf.mxu0
    %v921 = vadd.f32 %v895, %v920
    %v922 = vpop.f32.mrf.mxu0
    %v923 = vadd.f32 %v895, %v922
    %924 = vdwg.mxu0
    %v925 = vpack.c.bf16 %v923, %v921
    %927 = vrot.lane.b32.xlu0 %v925, 96
    %v928 = vpop.permute.xlu0 %927
    %v930 = vsel %vm204, %v925, 0
    %v933 = vsel %vm204, %v928, 0
    %935 = vmatpush.bf16.xpose.msra.mxu0 0
    %936 = vmatpush.bf16.xpose.msra.mxu0 0
    %937 = vmatpush.bf16.xpose.msra.mxu0 0
    %938 = vmatpush.bf16.xpose.msra.mxu0 0
    %939 = vmatpush.bf16.xpose.msra.mxu0 0
    %940 = vmatpush.bf16.xpose.msra.mxu0 0
    %941 = vmatpush.bf16.xpose.msra.mxu0 0
    %942 = vmatpush.bf16.xpose.msra.mxu0 %v933
    %943 = vmatmul.bf16.gmra.mxu0 %v930
    %v944 = vpop.f32.mrf.mxu0
    %v945 = vadd.f32 %v162, %v944
    %v946 = vpop.f32.mrf.mxu0
    %v947 = vadd.f32 %v163, %v946
    %948 = vdwg.mxu0
    %v949 = vsel %vm225, %v945, -inf
    %950 = vmax.xlane.f32.xlu0 %v949
    %v951 = vpop.xlane.xlu0 %950
    %v952 = vsel %vm225, %v947, -inf
    %953 = vmax.xlane.f32.xlu0 %v952
    %v954 = vpop.xlane.xlu0 %953
    %v955 = vsub.f32 %v945, %v951
    %v956 = vsub.f32 %v947, %v954
    %v957 = vmul.f32 %v955, 1.442695
    %v958 = vpow.pop %v957
    %v959 = vmul.f32 %v956, 1.442695
    %v960 = vpow.pop %v959
    %v961 = vsel %vm225, %v958, 0.0
    %962 = vadd.xlane.f32.xlu0 %v961
    %v963 = vpop.xlane.xlu0 %962
    %v964 = vsel %vm225, %v960, 0.0
    %965 = vadd.xlane.f32.xlu0 %v964
    %v966 = vpop.xlane.xlu0 %965
    %v967 = vrcp.pop %v963
    %v968 = vmul.f32 %v963, %v967
    %v969 = vsub.f32 1.0, %v968
    %v970 = vmul.f32 %v967, %v969
    %v971 = vadd.f32 %v967, %v970
    %vm972 = vweird.f32 %v963
    %vm973 = vweird.f32 %v967
    %vm974 = vmor %vm972, %vm973
    %v975 = vsel %vm974, %v967, %v971
    %v976 = vand.u32 2147483647, %v963
    %vm977 = vcmp.eq.f32.partialorder %v976, 8.507059e+37
    %v978 = vand.u32 %v963, 2147483648
    %v979 = vor.u32 1.1754944e-38, %v978
    %v980 = vsel %vm977, %v979, %v975
    %v981 = vmul.f32 %v958, %v980
    %v982 = vrcp.pop %v966
    %v983 = vmul.f32 %v966, %v982
    %v984 = vsub.f32 1.0, %v983
    %v985 = vmul.f32 %v982, %v984
    %v986 = vadd.f32 %v982, %v985
    %vm987 = vweird.f32 %v966
    %vm988 = vweird.f32 %v982
    %vm989 = vmor %vm987, %vm988
    %v990 = vsel %vm989, %v982, %v986
    %v991 = vand.u32 2147483647, %v966
    %vm992 = vcmp.eq.f32.partialorder %v991, 8.507059e+37
    %v993 = vand.u32 %v966, 2147483648
    %v994 = vor.u32 1.1754944e-38, %v993
    %v995 = vsel %vm992, %v994, %v990
    %v996 = vmul.f32 %v960, %v995
    %v997 = vpack.c.bf16 %v996, %v981
    %998 = vrot.lane.b32.xlu0 %v925, 64
    %v999 = vpop.permute.xlu0 %998
    %v1002 = vsel %vm225, %v997, 0
    %1004 = vmatpush.bf16.msra.mxu0 0
    %1005 = vmatpush.bf16.msra.mxu0 0
    %1006 = vmatpush.bf16.msra.mxu0 0
    %1007 = vmatpush.bf16.msra.mxu0 0
    %1008 = vmatpush.bf16.msra.mxu0 0
    %1009 = vmatpush.bf16.msra.mxu0 0
    %1010 = vmatpush.bf16.msra.mxu0 0
    %1011 = vmatpush.bf16.msra.mxu0 %v999
    %1012 = vmatmul.bf16.gmra.mxu0 %v1002
    %v1013 = vpop.f32.mrf.mxu0
    %v1014 = vadd.f32 0.0, %v1013
    %v1015 = vpop.f32.mrf.mxu0
    %v1016 = vadd.f32 0.0, %v1015
    %1017 = vdwg.mxu0
    %v1018 = vpack.c.bf16 %v1016, %v1014
    %s1019 = scalar_lea.vmem %s5, 16
    %v1020 = vld [vmem:[%s1019] sm:$0xf]
    %1021 = vrot.lane.b32.xlu0 %v925, 120
    %v1022 = vpop.permute.xlu0 %1021
    %1023 = vrot.lane.b32.xlu0 %v925, 88
    %v1024 = vpop.permute.xlu0 %1023
    %v1026 = vsel %vm204, %v1022, 0
    %v1029 = vsel %vm204, %v1024, 0
    %1031 = vmatpush.bf16.xpose.msra.mxu0 0
    %1032 = vmatpush.bf16.xpose.msra.mxu0 0
    %1033 = vmatpush.bf16.xpose.msra.mxu0 0
    %1034 = vmatpush.bf16.xpose.msra.mxu0 0
    %1035 = vmatpush.bf16.xpose.msra.mxu0 0
    %1036 = vmatpush.bf16.xpose.msra.mxu0 0
    %1037 = vmatpush.bf16.xpose.msra.mxu0 0
    %1038 = vmatpush.bf16.xpose.msra.mxu0 %v1029
    %1039 = vmatmul.bf16.gmra.mxu0 %v1026
    %v1040 = vpop.f32.mrf.mxu0
    %v1041 = vadd.f32 %v162, %v1040
    %v1042 = vpop.f32.mrf.mxu0
    %v1043 = vadd.f32 %v163, %v1042
    %1044 = vdwg.mxu0
    %v1045 = vsel %vm225, %v1041, -inf
    %1046 = vmax.xlane.f32.xlu0 %v1045
    %v1047 = vpop.xlane.xlu0 %1046
    %v1048 = vsel %vm225, %v1043, -inf
    %1049 = vmax.xlane.f32.xlu0 %v1048
    %v1050 = vpop.xlane.xlu0 %1049
    %v1051 = vsub.f32 %v1041, %v1047
    %v1052 = vsub.f32 %v1043, %v1050
    %v1053 = vmul.f32 %v1051, 1.442695
    %v1054 = vpow.pop %v1053
    %v1055 = vmul.f32 %v1052, 1.442695
    %v1056 = vpow.pop %v1055
    %v1057 = vsel %vm225, %v1054, 0.0
    %1058 = vadd.xlane.f32.xlu0 %v1057
    %v1059 = vpop.xlane.xlu0 %1058
    %v1060 = vsel %vm225, %v1056, 0.0
    %1061 = vadd.xlane.f32.xlu0 %v1060
    %v1062 = vpop.xlane.xlu0 %1061
    %v1063 = vrcp.pop %v1059
    %v1064 = vmul.f32 %v1059, %v1063
    %v1065 = vsub.f32 1.0, %v1064
    %v1066 = vmul.f32 %v1063, %v1065
    %v1067 = vadd.f32 %v1063, %v1066
    %vm1068 = vweird.f32 %v1059
    %vm1069 = vweird.f32 %v1063
    %vm1070 = vmor %vm1068, %vm1069
    %v1071 = vsel %vm1070, %v1063, %v1067
    %v1072 = vand.u32 2147483647, %v1059
    %vm1073 = vcmp.eq.f32.partialorder %v1072, 8.507059e+37
    %v1074 = vand.u32 %v1059, 2147483648
    %v1075 = vor.u32 1.1754944e-38, %v1074
    %v1076 = vsel %vm1073, %v1075, %v1071
    %v1077 = vmul.f32 %v1054, %v1076
    %v1078 = vrcp.pop %v1062
    %v1079 = vmul.f32 %v1062, %v1078
    %v1080 = vsub.f32 1.0, %v1079
    %v1081 = vmul.f32 %v1078, %v1080
    %v1082 = vadd.f32 %v1078, %v1081
    %vm1083 = vweird.f32 %v1062
    %vm1084 = vweird.f32 %v1078
    %vm1085 = vmor %vm1083, %vm1084
    %v1086 = vsel %vm1085, %v1078, %v1082
    %v1087 = vand.u32 2147483647, %v1062
    %vm1088 = vcmp.eq.f32.partialorder %v1087, 8.507059e+37
    %v1089 = vand.u32 %v1062, 2147483648
    %v1090 = vor.u32 1.1754944e-38, %v1089
    %v1091 = vsel %vm1088, %v1090, %v1086
    %v1092 = vmul.f32 %v1056, %v1091
    %v1093 = vpack.c.bf16 %v1092, %v1077
    %1094 = vrot.lane.b32.xlu0 %v925, 56
    %v1095 = vpop.permute.xlu0 %1094
    %v1098 = vsel %vm225, %v1093, 0
    %1100 = vmatpush.bf16.msra.mxu0 0
    %1101 = vmatpush.bf16.msra.mxu0 0
    %1102 = vmatpush.bf16.msra.mxu0 0
    %1103 = vmatpush.bf16.msra.mxu0 0
    %1104 = vmatpush.bf16.msra.mxu0 0
    %1105 = vmatpush.bf16.msra.mxu0 0
    %1106 = vmatpush.bf16.msra.mxu0 0
    %1107 = vmatpush.bf16.msra.mxu0 %v1095
    %1108 = vmatmul.bf16.gmra.mxu0 %v1098
    %v1109 = vpop.f32.mrf.mxu0
    %v1110 = vadd.f32 0.0, %v1109
    %v1111 = vpop.f32.mrf.mxu0
    %v1112 = vadd.f32 0.0, %v1111
    %1113 = vdwg.mxu0
    %v1114 = vpack.c.bf16 %v1112, %v1110
    %s1115 = scalar_lea.vmem %s5, 20
    %v1116 = vld [vmem:[%s1115] sm:$0xf]
    %v1118 = vsel %vm204, %v1114, 0
    %v1121 = vsel %vm75, %v1116, 0
    %1123 = vmatpush.bf16.msra.mxu0 0
    %1124 = vmatpush.bf16.msra.mxu0 0
    %1125 = vmatpush.bf16.msra.mxu0 0
    %1126 = vmatpush.bf16.msra.mxu0 0
    %1127 = vmatpush.bf16.msra.mxu0 0
    %1128 = vmatpush.bf16.msra.mxu0 0
    %1129 = vmatpush.bf16.msra.mxu0 0
    %1130 = vmatpush.bf16.msra.mxu0 %v1121
    %1131 = vmatmul.bf16.gmra.mxu0 %v1118
    %v1132 = vpop.f32.mrf.mxu0
    %v1133 = vadd.f32 0.0, %v1132
    %v1134 = vpop.f32.mrf.mxu0
    %v1135 = vadd.f32 0.0, %v1134
    %1136 = vdwg.mxu0
    %v1138 = vsel %vm204, %v1018, 0
    %v1141 = vsel %vm75, %v1020, 0
    %1143 = vmatpush.bf16.msra.mxu0 0
    %1144 = vmatpush.bf16.msra.mxu0 0
    %1145 = vmatpush.bf16.msra.mxu0 0
    %1146 = vmatpush.bf16.msra.mxu0 0
    %1147 = vmatpush.bf16.msra.mxu0 0
    %1148 = vmatpush.bf16.msra.mxu0 0
    %1149 = vmatpush.bf16.msra.mxu0 0
    %1150 = vmatpush.bf16.msra.mxu0 %v1141
    %1151 = vmatmul.bf16.gmra.mxu0 %v1138
    %v1152 = vpop.f32.mrf.mxu0
    %v1153 = vadd.f32 %v1133, %v1152
    %v1154 = vpop.f32.mrf.mxu0
    %v1155 = vadd.f32 %v1135, %v1154
    %1156 = vdwg.mxu0
    %1157 = vrot.lane.b32.xlu0 %v925, 112
    %v1158 = vpop.permute.xlu0 %1157
    %1159 = vrot.lane.b32.xlu0 %v925, 80
    %v1160 = vpop.permute.xlu0 %1159
    %v1162 = vsel %vm204, %v1158, 0
    %v1165 = vsel %vm204, %v1160, 0
    %1167 = vmatpush.bf16.xpose.msra.mxu0 0
    %1168 = vmatpush.bf16.xpose.msra.mxu0 0
    %1169 = vmatpush.bf16.xpose.msra.mxu0 0
    %1170 = vmatpush.bf16.xpose.msra.mxu0 0
    %1171 = vmatpush.bf16.xpose.msra.mxu0 0
    %1172 = vmatpush.bf16.xpose.msra.mxu0 0
    %1173 = vmatpush.bf16.xpose.msra.mxu0 0
    %1174 = vmatpush.bf16.xpose.msra.mxu0 %v1165
    %1175 = vmatmul.bf16.gmra.mxu0 %v1162
    %v1176 = vpop.f32.mrf.mxu0
    %v1177 = vadd.f32 %v162, %v1176
    %v1178 = vpop.f32.mrf.mxu0
    %v1179 = vadd.f32 %v163, %v1178
    %1180 = vdwg.mxu0
    %v1181 = vsel %vm225, %v1177, -inf
    %1182 = vmax.xlane.f32.xlu0 %v1181
    %v1183 = vpop.xlane.xlu0 %1182
    %v1184 = vsel %vm225, %v1179, -inf
    %1185 = vmax.xlane.f32.xlu0 %v1184
    %v1186 = vpop.xlane.xlu0 %1185
    %v1187 = vsub.f32 %v1177, %v1183
    %v1188 = vsub.f32 %v1179, %v1186
    %v1189 = vmul.f32 %v1187, 1.442695
    %v1190 = vpow.pop %v1189
    %v1191 = vmul.f32 %v1188, 1.442695
    %v1192 = vpow.pop %v1191
    %v1193 = vsel %vm225, %v1190, 0.0
    %1194 = vadd.xlane.f32.xlu0 %v1193
    %v1195 = vpop.xlane.xlu0 %1194
    %v1196 = vsel %vm225, %v1192, 0.0
    %1197 = vadd.xlane.f32.xlu0 %v1196
    %v1198 = vpop.xlane.xlu0 %1197
    %v1199 = vrcp.pop %v1195
    %v1200 = vmul.f32 %v1195, %v1199
    %v1201 = vsub.f32 1.0, %v1200
    %v1202 = vmul.f32 %v1199, %v1201
    %v1203 = vadd.f32 %v1199, %v1202
    %vm1204 = vweird.f32 %v1195
    %vm1205 = vweird.f32 %v1199
    %vm1206 = vmor %vm1204, %vm1205
    %v1207 = vsel %vm1206, %v1199, %v1203
    %v1208 = vand.u32 2147483647, %v1195
    %vm1209 = vcmp.eq.f32.partialorder %v1208, 8.507059e+37
    %v1210 = vand.u32 %v1195, 2147483648
    %v1211 = vor.u32 1.1754944e-38, %v1210
    %v1212 = vsel %vm1209, %v1211, %v1207
    %v1213 = vmul.f32 %v1190, %v1212
    %v1214 = vrcp.pop %v1198
    %v1215 = vmul.f32 %v1198, %v1214
    %v1216 = vsub.f32 1.0, %v1215
    %v1217 = vmul.f32 %v1214, %v1216
    %v1218 = vadd.f32 %v1214, %v1217
    %vm1219 = vweird.f32 %v1198
    %vm1220 = vweird.f32 %v1214
    %vm1221 = vmor %vm1219, %vm1220
    %v1222 = vsel %vm1221, %v1214, %v1218
    %v1223 = vand.u32 2147483647, %v1198
    %vm1224 = vcmp.eq.f32.partialorder %v1223, 8.507059e+37
    %v1225 = vand.u32 %v1198, 2147483648
    %v1226 = vor.u32 1.1754944e-38, %v1225
    %v1227 = vsel %vm1224, %v1226, %v1222
    %v1228 = vmul.f32 %v1192, %v1227
    %v1229 = vpack.c.bf16 %v1228, %v1213
    %1230 = vrot.lane.b32.xlu0 %v925, 48
    %v1231 = vpop.permute.xlu0 %1230
    %v1234 = vsel %vm225, %v1229, 0
    %1236 = vmatpush.bf16.msra.mxu0 0
    %1237 = vmatpush.bf16.msra.mxu0 0
    %1238 = vmatpush.bf16.msra.mxu0 0
    %1239 = vmatpush.bf16.msra.mxu0 0
    %1240 = vmatpush.bf16.msra.mxu0 0
    %1241 = vmatpush.bf16.msra.mxu0 0
    %1242 = vmatpush.bf16.msra.mxu0 0
    %1243 = vmatpush.bf16.msra.mxu0 %v1231
    %1244 = vmatmul.bf16.gmra.mxu0 %v1234
    %v1245 = vpop.f32.mrf.mxu0
    %v1246 = vadd.f32 0.0, %v1245
    %v1247 = vpop.f32.mrf.mxu0
    %v1248 = vadd.f32 0.0, %v1247
    %1249 = vdwg.mxu0
    %v1250 = vpack.c.bf16 %v1248, %v1246
    %s1251 = scalar_lea.vmem %s5, 24
    %v1252 = vld [vmem:[%s1251] sm:$0xf]
    %v1254 = vsel %vm204, %v1250, 0
    %v1257 = vsel %vm75, %v1252, 0
    %1259 = vmatpush.bf16.msra.mxu0 0
    %1260 = vmatpush.bf16.msra.mxu0 0
    %1261 = vmatpush.bf16.msra.mxu0 0
    %1262 = vmatpush.bf16.msra.mxu0 0
    %1263 = vmatpush.bf16.msra.mxu0 0
    %1264 = vmatpush.bf16.msra.mxu0 0
    %1265 = vmatpush.bf16.msra.mxu0 0
    %1266 = vmatpush.bf16.msra.mxu0 %v1257
    %1267 = vmatmul.bf16.gmra.mxu0 %v1254
    %v1268 = vpop.f32.mrf.mxu0
    %v1269 = vadd.f32 0.0, %v1268
    %v1270 = vpop.f32.mrf.mxu0
    %v1271 = vadd.f32 0.0, %v1270
    %1272 = vdwg.mxu0
    %v1273 = vadd.f32 %v1153, %v1269
    %v1274 = vadd.f32 %v1155, %v1271
    %1275 = vrot.lane.b32.xlu0 %v925, 104
    %v1276 = vpop.permute.xlu0 %1275
    %1277 = vrot.lane.b32.xlu0 %v925, 72
    %v1278 = vpop.permute.xlu0 %1277
    %v1280 = vsel %vm204, %v1276, 0
    %v1283 = vsel %vm204, %v1278, 0
    %1285 = vmatpush.bf16.xpose.msra.mxu0 0
    %1286 = vmatpush.bf16.xpose.msra.mxu0 0
    %1287 = vmatpush.bf16.xpose.msra.mxu0 0
    %1288 = vmatpush.bf16.xpose.msra.mxu0 0
    %1289 = vmatpush.bf16.xpose.msra.mxu0 0
    %1290 = vmatpush.bf16.xpose.msra.mxu0 0
    %1291 = vmatpush.bf16.xpose.msra.mxu0 0
    %1292 = vmatpush.bf16.xpose.msra.mxu0 %v1283
    %1293 = vmatmul.bf16.gmra.mxu0 %v1280
    %v1294 = vpop.f32.mrf.mxu0
    %v1295 = vadd.f32 %v162, %v1294
    %v1296 = vpop.f32.mrf.mxu0
    %v1297 = vadd.f32 %v163, %v1296
    %1298 = vdwg.mxu0
    %v1299 = vsel %vm225, %v1295, -inf
    %1300 = vmax.xlane.f32.xlu0 %v1299
    %v1301 = vpop.xlane.xlu0 %1300
    %v1302 = vsel %vm225, %v1297, -inf
    %1303 = vmax.xlane.f32.xlu0 %v1302
    %v1304 = vpop.xlane.xlu0 %1303
    %v1305 = vsub.f32 %v1295, %v1301
    %v1306 = vsub.f32 %v1297, %v1304
    %v1307 = vmul.f32 %v1305, 1.442695
    %v1308 = vpow.pop %v1307
    %v1309 = vmul.f32 %v1306, 1.442695
    %v1310 = vpow.pop %v1309
    %v1311 = vsel %vm225, %v1308, 0.0
    %1312 = vadd.xlane.f32.xlu0 %v1311
    %v1313 = vpop.xlane.xlu0 %1312
    %v1314 = vsel %vm225, %v1310, 0.0
    %1315 = vadd.xlane.f32.xlu0 %v1314
    %v1316 = vpop.xlane.xlu0 %1315
    %v1317 = vrcp.pop %v1313
    %v1318 = vmul.f32 %v1313, %v1317
    %v1319 = vsub.f32 1.0, %v1318
    %v1320 = vmul.f32 %v1317, %v1319
    %v1321 = vadd.f32 %v1317, %v1320
    %vm1322 = vweird.f32 %v1313
    %vm1323 = vweird.f32 %v1317
    %vm1324 = vmor %vm1322, %vm1323
    %v1325 = vsel %vm1324, %v1317, %v1321
    %v1326 = vand.u32 2147483647, %v1313
    %vm1327 = vcmp.eq.f32.partialorder %v1326, 8.507059e+37
    %v1328 = vand.u32 %v1313, 2147483648
    %v1329 = vor.u32 1.1754944e-38, %v1328
    %v1330 = vsel %vm1327, %v1329, %v1325
    %v1331 = vmul.f32 %v1308, %v1330
    %v1332 = vrcp.pop %v1316
    %v1333 = vmul.f32 %v1316, %v1332
    %v1334 = vsub.f32 1.0, %v1333
    %v1335 = vmul.f32 %v1332, %v1334
    %v1336 = vadd.f32 %v1332, %v1335
    %vm1337 = vweird.f32 %v1316
    %vm1338 = vweird.f32 %v1332
    %vm1339 = vmor %vm1337, %vm1338
    %v1340 = vsel %vm1339, %v1332, %v1336
    %v1341 = vand.u32 2147483647, %v1316
    %vm1342 = vcmp.eq.f32.partialorder %v1341, 8.507059e+37
    %v1343 = vand.u32 %v1316, 2147483648
    %v1344 = vor.u32 1.1754944e-38, %v1343
    %v1345 = vsel %vm1342, %v1344, %v1340
    %v1346 = vmul.f32 %v1310, %v1345
    %v1347 = vpack.c.bf16 %v1346, %v1331
    %1348 = vrot.lane.b32.xlu0 %v925, 40
    %v1349 = vpop.permute.xlu0 %1348
    %v1352 = vsel %vm225, %v1347, 0
    %1354 = vmatpush.bf16.msra.mxu0 0
    %1355 = vmatpush.bf16.msra.mxu0 0
    %1356 = vmatpush.bf16.msra.mxu0 0
    %1357 = vmatpush.bf16.msra.mxu0 0
    %1358 = vmatpush.bf16.msra.mxu0 0
    %1359 = vmatpush.bf16.msra.mxu0 0
    %1360 = vmatpush.bf16.msra.mxu0 0
    %1361 = vmatpush.bf16.msra.mxu0 %v1349
    %1362 = vmatmul.bf16.gmra.mxu0 %v1352
    %v1363 = vpop.f32.mrf.mxu0
    %v1364 = vadd.f32 0.0, %v1363
    %v1365 = vpop.f32.mrf.mxu0
    %v1366 = vadd.f32 0.0, %v1365
    %1367 = vdwg.mxu0
    %v1368 = vpack.c.bf16 %v1366, %v1364
    %s1369 = scalar_lea.vmem %s5, 28
    %v1370 = vld [vmem:[%s1369] sm:$0xf]
    %v1372 = vsel %vm204, %v1368, 0
    %v1375 = vsel %vm75, %v1370, 0
    %1377 = vmatpush.bf16.msra.mxu0 0
    %1378 = vmatpush.bf16.msra.mxu0 0
    %1379 = vmatpush.bf16.msra.mxu0 0
    %1380 = vmatpush.bf16.msra.mxu0 0
    %1381 = vmatpush.bf16.msra.mxu0 0
    %1382 = vmatpush.bf16.msra.mxu0 0
    %1383 = vmatpush.bf16.msra.mxu0 0
    %1384 = vmatpush.bf16.msra.mxu0 %v1375
    %1385 = vmatmul.bf16.gmra.mxu0 %v1372
    %v1386 = vpop.f32.mrf.mxu0
    %v1387 = vadd.f32 0.0, %v1386
    %v1388 = vpop.f32.mrf.mxu0
    %v1389 = vadd.f32 0.0, %v1388
    %1390 = vdwg.mxu0
    %v1391 = vadd.f32 %v1273, %v1387
    %v1392 = vadd.f32 %v1274, %v1389
    %v1393 = vld [vmem:[%s9 + $0xb] sm:$0x1]
    %v1394 = vperm.slane %v1393, 0
    %v1395 = vadd.f32 %v1391, %v1394
    %v1396 = vadd.f32 %v1392, %v1394
    %v1397 = vadd.f32 %v1395, %v886
    %v1398 = vadd.f32 %v1396, %v887
    %v1399 = vld [vmem:[%s9 + $0xc] sm:$0x1]
    %v1400 = vld [vmem:[%s9 + $0xd] sm:$0x1]
    %v1401 = vsel %vm104, %v1397, 0.0
    %1402 = vadd.xlane.f32.xlu0 %v1401
    %v1403 = vpop.xlane.xlu0 %1402
    %v1404 = vsel %vm104, %v1398, 0.0
    %1405 = vadd.xlane.f32.xlu0 %v1404
    %v1406 = vpop.xlane.xlu0 %1405
    %v1407 = vmul.f32 %v1403, %v117
    %v1408 = vmul.f32 %v1406, %v117
    %v1409 = vsub.f32 %v1397, %v1407
    %v1410 = vsub.f32 %v1398, %v1408
    %v1411 = vmul.f32 %v1409, %v1409
    %v1412 = vmul.f32 %v1410, %v1410
    %v1413 = vsel %vm104, %v1411, 0.0
    %1414 = vadd.xlane.f32.xlu0 %v1413
    %v1415 = vpop.xlane.xlu0 %1414
    %v1416 = vsel %vm104, %v1412, 0.0
    %1417 = vadd.xlane.f32.xlu0 %v1416
    %v1418 = vpop.xlane.xlu0 %1417
    %v1419 = vmul.f32 %v1415, %v117
    %v1420 = vmul.f32 %v1418, %v117
    %v1421 = vadd.f32 %v1419, 1e-12
    %v1422 = vadd.f32 %v1420, 1e-12
    %v1423 = vrsqrt.pop %v1421
    %v1424 = vmul.f32 %v1423, %v1421
    %v1425 = vmul.f32 %v1424, %v1423
    %v1426 = vmul.f32 0.5, %v1425
    %v1427 = vsub.f32 1.5, %v1426
    %v1428 = vmul.f32 %v1423, %v1427
    %vm1429 = vweird.f32 %v1421
    %vm1430 = vweird.f32 %v1423
    %vm1431 = vmor %vm1429, %vm1430
    %v1432 = vsel %vm1431, %v1423, %v1428
    %v1433 = vrsqrt.pop %v1422
    %v1434 = vmul.f32 %v1433, %v1422
    %v1435 = vmul.f32 %v1434, %v1433
    %v1436 = vmul.f32 0.5, %v1435
    %v1437 = vsub.f32 1.5, %v1436
    %v1438 = vmul.f32 %v1433, %v1437
    %vm1439 = vweird.f32 %v1422
    %vm1440 = vweird.f32 %v1433
    %vm1441 = vmor %vm1439, %vm1440
    %v1442 = vsel %vm1441, %v1433, %v1438
    %v1443 = vmul.f32 %v1409, %v1432
    %v1444 = vmul.f32 %v1410, %v1442
    %v1445 = vperm.slane %v1399, 0
    %v1446 = vmul.f32 %v1443, %v1445
    %v1447 = vmul.f32 %v1444, %v1445
    %v1448 = vperm.slane %v1400, 0
    %v1449 = vadd.f32 %v1446, %v1448
    %v1450 = vadd.f32 %v1447, %v1448
    %s1451 = scalar_lea.vmem %s6, 16
    %v1452 = vld [vmem:[%s1451] sm:$0xf]
    %v1453 = vld [vmem:[%s1451 + $0x4] sm:$0xf]
    %v1454 = vld [vmem:[%s1451 + $0x8] sm:$0xf]
    %v1455 = vld [vmem:[%s1451 + $0xc] sm:$0xf]
    %v1456 = vld [vmem:[%s9 + $0xe] sm:$0x1]
    %v1457 = vpack.c.bf16 %v1450, %v1449
    %v1458 = vperm.slane %v1456, 0
    %v1463 = vunpack.c.l.b16 %v1452
    %v1464 = vunpack.c.l.b16 %v1453
    %v1465 = vunpack.c.l.b16 %v1454
    %v1466 = vunpack.c.l.b16 %v1455
    %v1467 = vpack.c.b16 %v1464, %v1463
    %v1468 = vpack.c.b16 %v1466, %v1465
    %v1472 = vsel %vm104, %v1457, 0
    %1474 = vmatpush.bf16.msra.mxu0 0
    %1475 = vmatpush.bf16.msra.mxu0 0
    %1476 = vmatpush.bf16.msra.mxu0 0
    %1477 = vmatpush.bf16.msra.mxu0 0
    %1478 = vmatpush.bf16.msra.mxu0 0
    %1479 = vmatpush.bf16.msra.mxu0 0
    %1480 = vmatpush.bf16.msra.mxu0 %v1468
    %1481 = vmatpush.bf16.msra.mxu0 %v1467
    %1482 = vmatmul.bf16.gmra.mxu0 %v1472
    %v1483 = vpop.f32.mrf.mxu0
    %v1484 = vadd.f32 %v1458, %v1483
    %v1485 = vpop.f32.mrf.mxu0
    %v1486 = vadd.f32 %v1458, %v1485
    %1487 = vdwg.mxu0
    %v1488 = vmul.f32 %v1484, 0.5
    %v1489 = vmul.f32 %v1486, 0.5
    %v1490 = vmul.f32 %v1484, 0.044715
    %v1491 = vmul.f32 %v1486, 0.044715
    %v1492 = vmul.f32 %v1490, %v1484
    %v1493 = vmul.f32 %v1491, %v1486
    %v1494 = vmul.f32 %v1492, %v1484
    %v1495 = vmul.f32 %v1493, %v1486
    %v1496 = vadd.f32 %v1484, %v1494
    %v1497 = vadd.f32 %v1486, %v1495
    %v1498 = vmul.f32 %v1496, 0.7978846
    %v1499 = vmul.f32 %v1497, 0.7978846
    %v1500 = vtanh.pop %v1498
    %v1501 = vtanh.pop %v1499
    %v1502 = vadd.f32 %v1500, 1.0
    %v1503 = vadd.f32 %v1501, 1.0
    %v1504 = vmul.f32 %v1488, %v1502
    %v1505 = vmul.f32 %v1489, %v1503
    %s1506 = scalar_lea.vmem %s7, 32
    %v1507 = vld [vmem:[%s1506] sm:$0xf]
    %v1508 = vld [vmem:[%s1506 + $0x4] sm:$0xf]
    %v1509 = vld [vmem:[%s1506 + $0x8] sm:$0xf]
    %v1510 = vld [vmem:[%s1506 + $0xc] sm:$0xf]
    %v1511 = vld [vmem:[%s1506 + $0x10] sm:$0xf]
    %v1512 = vld [vmem:[%s1506 + $0x14] sm:$0xf]
    %v1513 = vld [vmem:[%s1506 + $0x18] sm:$0xf]
    %v1514 = vld [vmem:[%s1506 + $0x1c] sm:$0xf]
    %v1515 = vld [vmem:[%s9 + $0xf] sm:$0x1]
    %v1516 = vpack.c.bf16 %v1505, %v1504
    %v1517 = vperm.slane %v1515, 0
    %v1526 = vunpack.c.l.b16 %v1507
    %v1527 = vunpack.c.l.b16 %v1508
    %v1528 = vunpack.c.l.b16 %v1509
    %v1529 = vunpack.c.l.b16 %v1510
    %v1530 = vunpack.c.l.b16 %v1511
    %v1531 = vunpack.c.l.b16 %v1512
    %v1532 = vunpack.c.l.b16 %v1513
    %v1533 = vunpack.c.l.b16 %v1514
    %v1534 = vpack.c.b16 %v1527, %v1526
    %v1535 = vpack.c.b16 %v1529, %v1528
    %v1536 = vpack.c.b16 %v1531, %v1530
    %v1537 = vpack.c.b16 %v1533, %v1532
    %v1543 = vsel %vm816, %v1516, 0
    %1545 = vmatpush.bf16.msra.mxu0 0
    %1546 = vmatpush.bf16.msra.mxu0 0
    %1547 = vmatpush.bf16.msra.mxu0 0
    %1548 = vmatpush.bf16.msra.mxu0 0
    %1549 = vmatpush.bf16.msra.mxu0 %v1537
    %1550 = vmatpush.bf16.msra.mxu0 %v1536
    %1551 = vmatpush.bf16.msra.mxu0 %v1535
    %1552 = vmatpush.bf16.msra.mxu0 %v1534
    %1553 = vmatmul.bf16.gmra.mxu0 %v1543
    %v1554 = vpop.f32.mrf.mxu0
    %v1555 = vadd.f32 %v1517, %v1554
    %v1556 = vpop.f32.mrf.mxu0
    %v1557 = vadd.f32 %v1517, %v1556
    %1558 = vdwg.mxu0
    %v1559 = vadd.f32 %v1555, %v1449
    %v1560 = vadd.f32 %v1557, %v1450
    %v1561 = vld [vmem:[%s9 + $0x10] sm:$0x1]
    %v1562 = vld [vmem:[%s9 + $0x11] sm:$0x1]
    %v1563 = vsel %vm104, %v1559, 0.0
    %1564 = vadd.xlane.f32.xlu0 %v1563
    %v1565 = vpop.xlane.xlu0 %1564
    %v1566 = vsel %vm104, %v1560, 0.0
    %1567 = vadd.xlane.f32.xlu0 %v1566
    %v1568 = vpop.xlane.xlu0 %1567
    %v1569 = vmul.f32 %v1565, %v117
    %v1570 = vmul.f32 %v1568, %v117
    %v1571 = vsub.f32 %v1559, %v1569
    %v1572 = vsub.f32 %v1560, %v1570
    %v1573 = vmul.f32 %v1571, %v1571
    %v1574 = vmul.f32 %v1572, %v1572
    %v1575 = vsel %vm104, %v1573, 0.0
    %1576 = vadd.xlane.f32.xlu0 %v1575
    %v1577 = vpop.xlane.xlu0 %1576
    %v1578 = vsel %vm104, %v1574, 0.0
    %1579 = vadd.xlane.f32.xlu0 %v1578
    %v1580 = vpop.xlane.xlu0 %1579
    %v1581 = vmul.f32 %v1577, %v117
    %v1582 = vmul.f32 %v1580, %v117
    %v1583 = vadd.f32 %v1581, 1e-12
    %v1584 = vadd.f32 %v1582, 1e-12
    %v1585 = vrsqrt.pop %v1583
    %v1586 = vmul.f32 %v1585, %v1583
    %v1587 = vmul.f32 %v1586, %v1585
    %v1588 = vmul.f32 0.5, %v1587
    %v1589 = vsub.f32 1.5, %v1588
    %v1590 = vmul.f32 %v1585, %v1589
    %vm1591 = vweird.f32 %v1583
    %vm1592 = vweird.f32 %v1585
    %vm1593 = vmor %vm1591, %vm1592
    %v1594 = vsel %vm1593, %v1585, %v1590
    %v1595 = vrsqrt.pop %v1584
    %v1596 = vmul.f32 %v1595, %v1584
    %v1597 = vmul.f32 %v1596, %v1595
    %v1598 = vmul.f32 0.5, %v1597
    %v1599 = vsub.f32 1.5, %v1598
    %v1600 = vmul.f32 %v1595, %v1599
    %vm1601 = vweird.f32 %v1584
    %vm1602 = vweird.f32 %v1595
    %vm1603 = vmor %vm1601, %vm1602
    %v1604 = vsel %vm1603, %v1595, %v1600
    %v1605 = vmul.f32 %v1571, %v1594
    %v1606 = vmul.f32 %v1572, %v1604
    %v1607 = vperm.slane %v1561, 0
    %v1608 = vmul.f32 %v1605, %v1607
    %v1609 = vmul.f32 %v1606, %v1607
    %v1610 = vperm.slane %v1562, 0
    %v1611 = vadd.f32 %v1608, %v1610
    %v1612 = vadd.f32 %v1609, %v1610
    %v1614 = vrot.slane %v1612, 7
    %vm1616 = vcmask 1040384
    %v1617 = vsel %vm1616, %v1611, %v1614
    %v1618 = vld [vmem:[%s8] sm:$0xf]
    %v1619 = vld [vmem:[%s8 + $0x4] sm:$0xf]
    %v1620 = vld [vmem:[%s8 + $0x8] sm:$0xf]
    %v1621 = vld [vmem:[%s8 + $0xc] sm:$0xf]
    %v1622 = vld [vmem:[%s9 + $0x12] sm:$0x1]
    %v1623 = vpack.c.bf16 %v1617, %v1617
    %v1624 = vperm.slane %v1622, 0
    %v1629 = vunpack.c.l.b16 %v1618
    %v1630 = vunpack.c.l.b16 %v1619
    %v1631 = vunpack.c.l.b16 %v1620
    %v1632 = vunpack.c.l.b16 %v1621
    %v1633 = vpack.c.b16 %v1630, %v1629
    %v1634 = vpack.c.b16 %v1632, %v1631
    %v1638 = vsel %vm104, %v1623, 0
    %1640 = vmatpush.bf16.msra.mxu0 0
    %1641 = vmatpush.bf16.msra.mxu0 0
    %1642 = vmatpush.bf16.msra.mxu0 0
    %1643 = vmatpush.bf16.msra.mxu0 0
    %1644 = vmatpush.bf16.msra.mxu0 0
    %1645 = vmatpush.bf16.msra.mxu0 0
    %1646 = vmatpush.bf16.msra.mxu0 %v1634
    %1647 = vmatpush.bf16.msra.mxu0 %v1633
    %1648 = vmatmul.bf16.gmra.mxu0 %v1638
    %v1649 = vpop.f32.mrf.mxu0
    %v1650 = vadd.f32 %v1624, %v1649
    %v1651 = vpop.f32.mrf.mxu0
    %1652 = vdwg.mxu0
    %v1653 = vtanh.pop %v1650
    %v1654 = vld [vmem:[%s9 + $0x13] sm:$0x1]
    %v1655 = vpack.c.bf16 %v1653, %v1653
    %v1656 = vperm.slane %v1654, 0
    %1657 = vrot.lane.b32.xlu0 %v1633, 96
    %v1658 = vpop.permute.xlu0 %1657
    %1659 = vrot.lane.b32.xlu0 %v1634, 96
    %v1660 = vpop.permute.xlu0 %1659
    %v1664 = vsel %vm104, %v1655, 0
    %1666 = vmatpush.bf16.msra.mxu0 0
    %1667 = vmatpush.bf16.msra.mxu0 0
    %1668 = vmatpush.bf16.msra.mxu0 0
    %1669 = vmatpush.bf16.msra.mxu0 0
    %1670 = vmatpush.bf16.msra.mxu0 0
    %1671 = vmatpush.bf16.msra.mxu0 0
    %1672 = vmatpush.bf16.msra.mxu0 %v1660
    %1673 = vmatpush.bf16.msra.mxu0 %v1658
    %1674 = vmatmul.bf16.gmra.mxu0 %v1664
    %v1675 = vpop.f32.mrf.mxu0
    %v1676 = vadd.f32 %v1656, %v1675
    %v1677 = vpop.f32.mrf.mxu0
    %1678 = vdwg.mxu0
    %vm1679 = vcmask 9216
    %1680 = vst.msk [vmem:[#allocation2] sm:$0x3] %vm1679, %v1676
    // Predicated region
    $region42: #{bert_news_classifier.1} parent=1 // pred_check
      _
    $region43: #{bert_news_classifier.1} parent=1 // pred_check_branch
      %1682 = sbr.rel (0) target = $region45
    $region44: #{bert_news_classifier.1} parent=1 // pred_region
      %1684 = vsyncadd [#allocation3], 0
      %s1686 = sshll.u32 [#allocation2], 4
      %s1687 = int_to_ptr.vmem [resolvable:$true] %s1686
      %s1688 = sshll.u32 %s10, 4
      %s1689 = int_to_ptr.hbm [resolvable:$true] %s1688
      %1691 = dma.vmem_to_hbm [thread:$0]  %s1687, 32, %s1689, [#allocation3]
    $region45: #{bert_news_classifier.1} parent=1 // pred_fallthru
      _
    // Predicated region
    $region46: #{bert_news_classifier.1} parent=1 // pred_check
      _
    $region47: #{bert_news_classifier.1} parent=1 // pred_check_branch
      %1693 = sbr.rel (0) target = $region49
    $region48: #{bert_news_classifier.1} parent=1 // pred_region
      %1695 = dma.done [#allocation3], 32
    $region49: #{bert_news_classifier.1} parent=1 // pred_fallthru
      _
    %1696 = vsyncpa [#allocation3], 1

</llo_original>
